<compile_context>
chip_gen: v5e
topology: v5e:2x2
jax: 0.10.0
libtpu: 0.0.40
codegen_flags: <defaults>
</compile_context>

<pallas_src>
import functools

import jax
import jax.numpy as jnp
from jax import lax
from jax.experimental import pallas as pl
from jax.experimental.pallas import tpu as pltpu


# ----------------------------------------------------------------------------
# In-kernel helpers
# ----------------------------------------------------------------------------
def _layer_norm(x, gamma, beta, eps=1e-6):
    # x: (S, D), gamma/beta: (1, D) -- matches torch.nn.LayerNorm(dim, eps=1e-6)
    mean = jnp.mean(x, axis=-1, keepdims=True)
    var = jnp.mean((x - mean) ** 2, axis=-1, keepdims=True)
    return (x - mean) * lax.rsqrt(var + eps) * gamma + beta


# ----------------------------------------------------------------------------
# One fused kernel for the whole encoder stack.
# grid = (B, L):  b = batch element ("parallel"), l = layer ("arbitrary").
# The activation is the output block (index map constant over l) -> it stays
# resident in VMEM across all layers of one batch element.
# ----------------------------------------------------------------------------
def _encoder_kernel(x_ref, bias_ref,
                    wqkv_ref, wo_ref, ag_ref, ab_ref,
                    w1_ref, b1_ref, w2_ref, b2_ref, fg_ref, fb_ref,
                    lng_ref, lnb_ref,
                    o_ref, *, heads, dk, dv):
    layer = pl.program_id(1)
    n_layers = pl.num_programs(1)

    @pl.when(layer == 0)
    def _seed():
        # seed the resident activation from the embedding + positional encoding
        o_ref[0] = x_ref[0]

    x = o_ref[0]                      # (S, D) f32, resident across the layer axis
    bias = bias_ref[0]                # (1, S) additive mask bias: 0 keep / -1e9 pad

    # ------------- multi-head self-attention -------------
    # Fused QKV projection for all heads in one wide MXU matmul.
    # The 1/sqrt(dk) softmax scale is already folded into the Q columns.
    wqkv = wqkv_ref[0].astype(jnp.float32)                 # (D, H*(2dk+dv))
    qkv = jnp.dot(x, wqkv, preferred_element_type=jnp.float32)  # (S, H*(2dk+dv))

    per_head = 2 * dk + dv
    ctx_heads = []
    # TODO(synk): at large `heads`/S switch this static unroll to lax.fori_loop
    # (or a grid axis) to bound vreg live ranges; trivial at this toy size.
    for h in range(heads):
        base = h * per_head
        qh = qkv[:, base:base + dk]                         # (S, dk)  (pre-scaled)
        kh = qkv[:, base + dk:base + 2 * dk]                # (S, dk)
        vh = qkv[:, base + 2 * dk:base + per_head]          # (S, dv)

        # q @ k^T without a materialized transpose (contract dim 1 vs dim 1)
        s = lax.dot_general(qh, kh, (((1,), (1,)), ((), ())),
                            preferred_element_type=jnp.float32)  # (S, S) f32
        s = s + bias                                        # masked_fill(mask==0, -1e9)
        s = s - jnp.max(s, axis=-1, keepdims=True)          # stable softmax, f32
        p = jnp.exp(s)
        p = p / jnp.sum(p, axis=-1, keepdims=True)

        ctx_heads.append(jnp.dot(p, vh, preferred_element_type=jnp.float32))

    ctx = ctx_heads[0] if heads == 1 else jnp.concatenate(ctx_heads, axis=-1)  # (S, H*dv)

    # single wide output projection instead of per-head accumulation
    attn = jnp.dot(ctx, wo_ref[0].astype(jnp.float32),
                   preferred_element_type=jnp.float32)      # (S, D)
    y = _layer_norm(attn + x, ag_ref[0], ab_ref[0])         # post-norm residual

    # ------------- position-wise feed-forward -------------
    hdn = jnp.dot(y, w1_ref[0].astype(jnp.float32),
                  preferred_element_type=jnp.float32) + b1_ref[0]
    hdn = jnp.maximum(hdn, 0.0)
    z = jnp.dot(hdn, w2_ref[0].astype(jnp.float32),
                preferred_element_type=jnp.float32) + b2_ref[0]
    z = _layer_norm(z + y, fg_ref[0], fb_ref[0])

    is_last = layer == n_layers - 1

    @pl.when(is_last)
    def _final():
        # final encoder LayerNorm fused into the last layer
        o_ref[0] = _layer_norm(z, lng_ref[...], lnb_ref[...])

    @pl.when(jnp.logical_not(is_last))
    def _mid():
        o_ref[0] = z


def encoder_stack(x, mask_bias, stack, final_g, final_b, *, heads, dk, dv):
    B, S, D = x.shape
    L = stack["wqkv"].shape[0]
    DI = stack["w1"].shape[-1]

    kernel = functools.partial(_encoder_kernel, heads=heads, dk=dk, dv=dv)

    def layer_spec(arr):
        zeros = (0,) * (arr.ndim - 1)
        return pl.BlockSpec((1,) + tuple(arr.shape[1:]), lambda b, l: (l,) + zeros)

    def const_spec(arr):
        zeros = (0,) * arr.ndim
        return pl.BlockSpec(tuple(arr.shape), lambda b, l: zeros)

    # advisory cost estimate so XLA schedules the glue ops around the call
    qkv_flops = 2 * S * D * (heads * (2 * dk + dv))
    attn_flops = heads * (2 * S * S * dk + 2 * S * S * dv)
    proj_flops = 2 * S * heads * dv * D
    ffn_flops = 2 * S * D * DI + 2 * S * DI * D
    flops = int(B * L * (qkv_flops + attn_flops + proj_flops + ffn_flops))
    transcendentals = int(B * L * (heads * S * S + 3 * S))
    weight_bytes = int(sum(int(v.nbytes) for v in stack.values())
                       + int(final_g.nbytes) + int(final_b.nbytes))
    bytes_accessed = int(B * weight_bytes + int(x.nbytes) + int(mask_bias.nbytes)
                         + B * S * D * 4)

    return pl.pallas_call(
        kernel,
        out_shape=jax.ShapeDtypeStruct((B, S, D), jnp.float32),
        grid=(B, L),
        in_specs=[
            pl.BlockSpec((1, S, D), lambda b, l: (b, 0, 0)),   # embedding input
            pl.BlockSpec((1, 1, S), lambda b, l: (b, 0, 0)),   # additive mask bias
            layer_spec(stack["wqkv"]), layer_spec(stack["wo"]),
            layer_spec(stack["attn_g"]), layer_spec(stack["attn_b"]),
            layer_spec(stack["w1"]), layer_spec(stack["b1"]),
            layer_spec(stack["w2"]), layer_spec(stack["b2"]),
            layer_spec(stack["ffn_g"]), layer_spec(stack["ffn_b"]),
            const_spec(final_g), const_spec(final_b),
        ],
        out_specs=pl.BlockSpec((1, S, D), lambda b, l: (b, 0, 0)),  # resident over l
        compiler_params=pltpu.CompilerParams(
            dimension_semantics=("parallel", "arbitrary"),
            vmem_limit_bytes=48 * 1024 * 1024),
        cost_estimate=pl.CostEstimate(flops=flops,
                                      transcendentals=transcendentals,
                                      bytes_accessed=bytes_accessed),
    )(x, mask_bias, stack["wqkv"], stack["wo"],
      stack["attn_g"], stack["attn_b"], stack["w1"], stack["b1"],
      stack["w2"], stack["b2"], stack["ffn_g"], stack["ffn_b"],
      final_g, final_b)


# ----------------------------------------------------------------------------
# Glue: positional table, parameter init, full encoder forward.
# ----------------------------------------------------------------------------
def sinusoid_table(n_position, d_hid):
    pos = jnp.arange(n_position, dtype=jnp.float32)[:, None]          # (P, 1)
    i = jnp.arange(d_hid)
    div = jnp.power(10000.0, (2 * (i // 2)).astype(jnp.float32) / d_hid)
    angle = pos / div                                                  # (P, D)
    return jnp.where((i % 2) == 0, jnp.sin(angle), jnp.cos(angle)).astype(jnp.float32)


def init_params(key, *, vocab, emb_dim, layers, heads, dk, dv,
                dim_model, dim_inner, pad_id):
    keys = jax.random.split(key, 3 + 12 * layers)
    kit = iter(keys)

    def rand(shape):
        return 0.05 * jax.random.normal(next(kit), shape, jnp.float32)

    emb = rand((vocab, emb_dim))
    emb = emb.at[pad_id].set(0.0)   # padding_idx row is zero

    scale = 1.0 / (dk ** 0.5)
    wqkv_l, wo_l, ag_l, ab_l = [], [], [], []
    w1_l, b1_l, w2_l, b2_l, fg_l, fb_l = [], [], [], [], [], []
    for _ in range(layers):
        wq = rand((dim_model, heads * dk)) * scale   # softmax scale folded into Q
        wk = rand((dim_model, heads * dk))
        wv = rand((dim_model, heads * dv))
        wo = rand((heads * dv, dim_model))
        # interleave per head: [q_h | k_h | v_h] contiguous column blocks
        per = []
        for h in range(heads):
            per.append(jnp.concatenate(
                [wq[:, h * dk:(h + 1) * dk],
                 wk[:, h * dk:(h + 1) * dk],
                 wv[:, h * dv:(h + 1) * dv]], axis=1))
        wqkv = jnp.concatenate(per, axis=1)          # (D, H*(2dk+dv))

        wqkv_l.append(wqkv.astype(jnp.bfloat16))     # bf16 storage halves weight DMA
        wo_l.append(wo.astype(jnp.bfloat16))
        w1_l.append(rand((dim_model, dim_inner)).astype(jnp.bfloat16))
        b1_l.append(rand((1, dim_inner)))
        w2_l.append(rand((dim_inner, dim_model)).astype(jnp.bfloat16))
        b2_l.append(rand((1, dim_model)))
        ag_l.append(1.0 + rand((1, dim_model)))
        ab_l.append(rand((1, dim_model)))
        fg_l.append(1.0 + rand((1, dim_model)))
        fb_l.append(rand((1, dim_model)))

    stack = dict(
        wqkv=jnp.stack(wqkv_l), wo=jnp.stack(wo_l),
        attn_g=jnp.stack(ag_l), attn_b=jnp.stack(ab_l),
        w1=jnp.stack(w1_l), b1=jnp.stack(b1_l),
        w2=jnp.stack(w2_l), b2=jnp.stack(b2_l),
        ffn_g=jnp.stack(fg_l), ffn_b=jnp.stack(fb_l),
    )
    final_g = 1.0 + rand((1, dim_model))
    final_b = rand((1, dim_model))
    return dict(emb=emb, stack=stack, final_g=final_g, final_b=final_b)


def _embed(params, source_seq, pos_table):
    S = source_seq.shape[1]
    x = jnp.take(params["emb"], source_seq, axis=0)            # (B, S, D) f32
    return x + pos_table[:S][None, :, :]


def _mask_bias(source_mask):
    # additive mask bias, computed once for all layers/heads: 0 keep, -1e9 pad
    return (source_mask.astype(jnp.float32) - 1.0) * 1e9       # (B, 1, S)


def encoder_forward(params, source_seq, source_mask, pos_table, *, heads, dk, dv):
    # dropout == identity (eval mode)
    x = _embed(params, source_seq, pos_table)
    mask_bias = _mask_bias(source_mask)
    return encoder_stack(x, mask_bias, params["stack"],
                         params["final_g"], params["final_b"],
                         heads=heads, dk=dk, dv=dv)


# ----------------------------------------------------------------------------
# Pure-JAX reference (same math, same stacked/bf16-stored weights) for a
# correctness check.
# ----------------------------------------------------------------------------
def _ln_ref(x, gamma, beta, eps=1e-6):
    mean = jnp.mean(x, axis=-1, keepdims=True)
    var = jnp.mean((x - mean) ** 2, axis=-1, keepdims=True)
    return (x - mean) * lax.rsqrt(var + eps) * gamma + beta


def encoder_forward_ref(params, source_seq, source_mask, pos_table, *, heads, dk, dv):
    x = _embed(params, source_seq, pos_table)
    bias = _mask_bias(source_mask)                 # (B, 1, S)
    st = params["stack"]
    L = st["wqkv"].shape[0]
    per_head = 2 * dk + dv
    out = x
    for l in range(L):
        qkv = jnp.einsum('bsd,de->bse', out, st["wqkv"][l].astype(jnp.float32))
        ctxs = []
        for h in range(heads):
            base = h * per_head
            qh = qkv[..., base:base + dk]
            kh = qkv[..., base + dk:base + 2 * dk]
            vh = qkv[..., base + 2 * dk:base + per_head]
            s = jnp.einsum('bsk,btk->bst', qh, kh) + bias
            p = jax.nn.softmax(s, axis=-1)
            ctxs.append(jnp.einsum('bst,btv->bsv', p, vh))
        ctx = jnp.concatenate(ctxs, axis=-1)
        attn = jnp.einsum('bsv,vd->bsd', ctx, st["wo"][l].astype(jnp.float32))
        y = _ln_ref(attn + out, st["attn_g"][l], st["attn_b"][l])
        hdn = jnp.maximum(
            jnp.einsum('bsd,di->bsi', y, st["w1"][l].astype(jnp.float32)) + st["b1"][l], 0.0)
        z = jnp.einsum('bsi,id->bsd', hdn, st["w2"][l].astype(jnp.float32)) + st["b2"][l]
        out = _ln_ref(z + y, st["ffn_g"][l], st["ffn_b"][l])
    return _ln_ref(out, params["final_g"], params["final_b"])


# TODO(synk): dropout layers are no-ops here (eval-mode semantics); stochastic
# training-mode dropout is not implemented.
# TODO(synk): for long sequences, add a query-tile grid axis (flash-style KV
# streaming) so the (S,S) scores stay bounded in VMEM (hard requirement on
# v7x's 64 MiB); unnecessary at S=8.

if __name__ == "__main__":
    B, S = 2, 8
    VOCAB, EMB_DIM = 16, 32
    LAYERS, HEADS = 2, 2
    DK = DV = 16
    DIM_MODEL, DIM_INNER = 32, 64
    PAD_ID = 0
    NUM_POS = 200

    key = jax.random.PRNGKey(0)
    pkey, skey = jax.random.split(key)

    params = init_params(pkey, vocab=VOCAB, emb_dim=EMB_DIM, layers=LAYERS,
                         heads=HEADS, dk=DK, dv=DV, dim_model=DIM_MODEL,
                         dim_inner=DIM_INNER, pad_id=PAD_ID)

    source_seq = jax.random.randint(skey, (B, S), 1, VOCAB, dtype=jnp.int32)
    source_seq = source_seq.at[1, -2:].set(PAD_ID)      # some padding in batch 1

    # pad mask, shape (B, 1, S): 1.0 where real token, 0.0 where pad
    source_mask = (source_seq != PAD_ID).astype(jnp.float32)[:, None, :]

    pos_table = sinusoid_table(NUM_POS, EMB_DIM)

    out = encoder_forward(params, source_seq, source_mask, pos_table,
                          heads=HEADS, dk=DK, dv=DV)
    out = jax.block_until_ready(out)

    assert out.shape == (B, S, DIM_MODEL)
    assert bool(jnp.all(jnp.isfinite(out)))

    ref = encoder_forward_ref(params, source_seq, source_mask, pos_table,
                              heads=HEADS, dk=DK, dv=DV)
    max_err = float(jnp.max(jnp.abs(out - ref)))
    assert max_err < 1e-1, f"mismatch vs pure-JAX reference: {max_err}"

    print("KERNEL_OK")
</pallas_src>

<mosaic_0001>
module attributes {stable_mosaic.version = 11 : i64} {
  func.func @_encoder_kernel(%arg0: i32, %arg1: i32, %arg2: memref<1x8x32xf32, #tpu.memory_space<vmem>>, %arg3: memref<1x1x8xf32, #tpu.memory_space<vmem>>, %arg4: memref<1x32x96xbf16, #tpu.memory_space<vmem>>, %arg5: memref<1x32x32xbf16, #tpu.memory_space<vmem>>, %arg6: memref<1x1x32xf32, #tpu.memory_space<vmem>>, %arg7: memref<1x1x32xf32, #tpu.memory_space<vmem>>, %arg8: memref<1x32x64xbf16, #tpu.memory_space<vmem>>, %arg9: memref<1x1x64xf32, #tpu.memory_space<vmem>>, %arg10: memref<1x64x32xbf16, #tpu.memory_space<vmem>>, %arg11: memref<1x1x32xf32, #tpu.memory_space<vmem>>, %arg12: memref<1x1x32xf32, #tpu.memory_space<vmem>>, %arg13: memref<1x1x32xf32, #tpu.memory_space<vmem>>, %arg14: memref<1x32xf32, #tpu.memory_space<vmem>>, %arg15: memref<1x32xf32, #tpu.memory_space<vmem>>, %arg16: memref<1x8x32xf32, #tpu.memory_space<vmem>>) attributes {dimension_semantics = [#tpu.dimension_semantics<parallel>, #tpu.dimension_semantics<arbitrary>], iteration_bounds = array<i64: 2, 2>, scalar_prefetch = 0 : i64, scratch_operands = 0 : i64, tpu.core_type = #tpu.core_type<tc>, window_params = [{transform_indices = @transform_0, window_bounds = array<i64: 1, 8, 32>}, {transform_indices = @transform_1, window_bounds = array<i64: 1, 1, 8>}, {transform_indices = @transform_2, window_bounds = array<i64: 1, 32, 96>}, {transform_indices = @transform_3, window_bounds = array<i64: 1, 32, 32>}, {transform_indices = @transform_4, window_bounds = array<i64: 1, 1, 32>}, {transform_indices = @transform_5, window_bounds = array<i64: 1, 1, 32>}, {transform_indices = @transform_6, window_bounds = array<i64: 1, 32, 64>}, {transform_indices = @transform_7, window_bounds = array<i64: 1, 1, 64>}, {transform_indices = @transform_8, window_bounds = array<i64: 1, 64, 32>}, {transform_indices = @transform_9, window_bounds = array<i64: 1, 1, 32>}, {transform_indices = @transform_10, window_bounds = array<i64: 1, 1, 32>}, {transform_indices = @transform_11, window_bounds = array<i64: 1, 1, 32>}, {pipeline_mode = #tpu.pipeline_mode<synchronous>, transform_indices = @transform_12, window_bounds = array<i64: 1, 32>}, {pipeline_mode = #tpu.pipeline_mode<synchronous>, transform_indices = @transform_13, window_bounds = array<i64: 1, 32>}, {transform_indices = @transform_14, window_bounds = array<i64: 1, 8, 32>}]} {
    %c0_i32 = arith.constant 0 : i32
    %0 = arith.cmpi eq, %arg1, %c0_i32 : i32
    %1 = arith.extui %0 : i1 to i32
    %c0_i32_0 = arith.constant 0 : i32
    %2 = arith.cmpi ne, %1, %c0_i32_0 : i32
    scf.if %2 {
      %c0_60 = arith.constant 0 : index
      %c0_61 = arith.constant 0 : index
      %c0_62 = arith.constant 0 : index
      %126 = vector.load %arg2[%c0_60, %c0_61, %c0_62] : memref<1x8x32xf32, #tpu.memory_space<vmem>>, vector<1x8x32xf32>
      %127 = vector.shape_cast %126 : vector<1x8x32xf32> to vector<8x32xf32>
      %c0_63 = arith.constant 0 : index
      %c0_64 = arith.constant 0 : index
      %c0_65 = arith.constant 0 : index
      %128 = vector.load %arg16[%c0_63, %c0_64, %c0_65] : memref<1x8x32xf32, #tpu.memory_space<vmem>>, vector<1x8x32xf32>
      %129 = vector.shape_cast %128 : vector<1x8x32xf32> to vector<8x32xf32>
      %130 = vector.shape_cast %127 : vector<8x32xf32> to vector<1x8x32xf32>
      tpu.vector_store %arg16[%c0_63, %c0_64, %c0_65], %130 {strides = array<i32>} : memref<1x8x32xf32, #tpu.memory_space<vmem>>, vector<1x8x32xf32>,
    } else {
    }
    %c0 = arith.constant 0 : index
    %c0_1 = arith.constant 0 : index
    %c0_2 = arith.constant 0 : index
    %3 = vector.load %arg16[%c0, %c0_1, %c0_2] : memref<1x8x32xf32, #tpu.memory_space<vmem>>, vector<1x8x32xf32>
    %4 = vector.shape_cast %3 : vector<1x8x32xf32> to vector<8x32xf32>
    %c0_3 = arith.constant 0 : index
    %c0_4 = arith.constant 0 : index
    %c0_5 = arith.constant 0 : index
    %5 = vector.load %arg3[%c0_3, %c0_4, %c0_5] : memref<1x1x8xf32, #tpu.memory_space<vmem>>, vector<1x1x8xf32>
    %6 = vector.shape_cast %5 : vector<1x1x8xf32> to vector<1x8xf32>
    %c0_6 = arith.constant 0 : index
    %c0_7 = arith.constant 0 : index
    %c0_8 = arith.constant 0 : index
    %7 = vector.load %arg4[%c0_6, %c0_7, %c0_8] : memref<1x32x96xbf16, #tpu.memory_space<vmem>>, vector<1x32x96xbf16>
    %8 = vector.shape_cast %7 : vector<1x32x96xbf16> to vector<32x96xbf16>
    %9 = arith.extf %8 : vector<32x96xbf16> to vector<32x96xf32>
    %cst = arith.constant dense<0.000000e+00> : vector<8x96xf32>
    %10 = tpu.matmul %4, %9, %cst {dimension_numbers = #tpu.dot_dimension_numbers<[1], [0], [0], [1], [0, 0, 1, 1], [], []>} : vector<8x32xf32>, vector<32x96xf32>, vector<8x96xf32> -> vector<8x96xf32>
    %11 = vector.extract_strided_slice %10 {offsets = [0, 0], sizes = [8, 16], strides = [1, 1]} : vector<8x96xf32> to vector<8x16xf32>
    %12 = vector.extract_strided_slice %10 {offsets = [0, 16], sizes = [8, 16], strides = [1, 1]} : vector<8x96xf32> to vector<8x16xf32>
    %13 = vector.extract_strided_slice %10 {offsets = [0, 32], sizes = [8, 16], strides = [1, 1]} : vector<8x96xf32> to vector<8x16xf32>
    %cst_9 = arith.constant dense<0.000000e+00> : vector<8x8xf32>
    %14 = tpu.matmul %11, %12, %cst_9 {dimension_numbers = #tpu.dot_dimension_numbers<[1], [1], [0], [0], [0, 0, 1, 0], [], []>} : vector<8x16xf32>, vector<8x16xf32>, vector<8x8xf32> -> vector<8x8xf32>
    %15 = vector.broadcast %6 : vector<1x8xf32> to vector<8x8xf32>
    %16 = arith.addf %14, %15 : vector<8x8xf32>
    %cst_10 = arith.constant dense<0xFF800000> : vector<8xf32>
    %17 = vector.multi_reduction <maximumf>, %16, %cst_10 [1] : vector<8x8xf32> to vector<8xf32>
    %18 = vector.shape_cast %17 : vector<8xf32> to vector<8x1xf32>
    %19 = vector.broadcast %18 : vector<8x1xf32> to vector<8x8xf32>
    %20 = arith.subf %16, %19 : vector<8x8xf32>
    %21 = math.exp %20 : vector<8x8xf32>
    %cst_11 = arith.constant dense<0.000000e+00> : vector<8xf32>
    %22 = vector.multi_reduction <add>, %21, %cst_11 [1] : vector<8x8xf32> to vector<8xf32>
    %23 = vector.shape_cast %22 : vector<8xf32> to vector<8x1xf32>
    %24 = vector.broadcast %23 : vector<8x1xf32> to vector<8x8xf32>
    %25 = arith.divf %21, %24 : vector<8x8xf32>
    %cst_12 = arith.constant dense<0.000000e+00> : vector<8x16xf32>
    %26 = tpu.matmul %25, %13, %cst_12 {dimension_numbers = #tpu.dot_dimension_numbers<[1], [0], [0], [1], [0, 0, 1, 1], [], []>} : vector<8x8xf32>, vector<8x16xf32>, vector<8x16xf32> -> vector<8x16xf32>
    %27 = vector.extract_strided_slice %10 {offsets = [0, 48], sizes = [8, 16], strides = [1, 1]} : vector<8x96xf32> to vector<8x16xf32>
    %28 = vector.extract_strided_slice %10 {offsets = [0, 64], sizes = [8, 16], strides = [1, 1]} : vector<8x96xf32> to vector<8x16xf32>
    %29 = vector.extract_strided_slice %10 {offsets = [0, 80], sizes = [8, 16], strides = [1, 1]} : vector<8x96xf32> to vector<8x16xf32>
    %cst_13 = arith.constant dense<0.000000e+00> : vector<8x8xf32>
    %30 = tpu.matmul %27, %28, %cst_13 {dimension_numbers = #tpu.dot_dimension_numbers<[1], [1], [0], [0], [0, 0, 1, 0], [], []>} : vector<8x16xf32>, vector<8x16xf32>, vector<8x8xf32> -> vector<8x8xf32>
    %31 = vector.broadcast %6 : vector<1x8xf32> to vector<8x8xf32>
    %32 = arith.addf %30, %31 : vector<8x8xf32>
    %cst_14 = arith.constant dense<0xFF800000> : vector<8xf32>
    %33 = vector.multi_reduction <maximumf>, %32, %cst_14 [1] : vector<8x8xf32> to vector<8xf32>
    %34 = vector.shape_cast %33 : vector<8xf32> to vector<8x1xf32>
    %35 = vector.broadcast %34 : vector<8x1xf32> to vector<8x8xf32>
    %36 = arith.subf %32, %35 : vector<8x8xf32>
    %37 = math.exp %36 : vector<8x8xf32>
    %cst_15 = arith.constant dense<0.000000e+00> : vector<8xf32>
    %38 = vector.multi_reduction <add>, %37, %cst_15 [1] : vector<8x8xf32> to vector<8xf32>
    %39 = vector.shape_cast %38 : vector<8xf32> to vector<8x1xf32>
    %40 = vector.broadcast %39 : vector<8x1xf32> to vector<8x8xf32>
    %41 = arith.divf %37, %40 : vector<8x8xf32>
    %cst_16 = arith.constant dense<0.000000e+00> : vector<8x16xf32>
    %42 = tpu.matmul %41, %29, %cst_16 {dimension_numbers = #tpu.dot_dimension_numbers<[1], [0], [0], [1], [0, 0, 1, 1], [], []>} : vector<8x8xf32>, vector<8x16xf32>, vector<8x16xf32> -> vector<8x16xf32>
    %43 = tpu.concatenate %26, %42 in 1 : vector<8x16xf32>, vector<8x16xf32> -> vector<8x32xf32>
    %c0_17 = arith.constant 0 : index
    %c0_18 = arith.constant 0 : index
    %c0_19 = arith.constant 0 : index
    %44 = vector.load %arg5[%c0_17, %c0_18, %c0_19] : memref<1x32x32xbf16, #tpu.memory_space<vmem>>, vector<1x32x32xbf16>
    %45 = vector.shape_cast %44 : vector<1x32x32xbf16> to vector<32x32xbf16>
    %46 = arith.extf %45 : vector<32x32xbf16> to vector<32x32xf32>
    %cst_20 = arith.constant dense<0.000000e+00> : vector<8x32xf32>
    %47 = tpu.matmul %43, %46, %cst_20 {dimension_numbers = #tpu.dot_dimension_numbers<[1], [0], [0], [1], [0, 0, 1, 1], [], []>} : vector<8x32xf32>, vector<32x32xf32>, vector<8x32xf32> -> vector<8x32xf32>
    %48 = arith.addf %47, %4 : vector<8x32xf32>
    %c0_21 = arith.constant 0 : index
    %c0_22 = arith.constant 0 : index
    %c0_23 = arith.constant 0 : index
    %49 = vector.load %arg6[%c0_21, %c0_22, %c0_23] : memref<1x1x32xf32, #tpu.memory_space<vmem>>, vector<1x1x32xf32>
    %50 = vector.shape_cast %49 : vector<1x1x32xf32> to vector<1x32xf32>
    %c0_24 = arith.constant 0 : index
    %c0_25 = arith.constant 0 : index
    %c0_26 = arith.constant 0 : index
    %51 = vector.load %arg7[%c0_24, %c0_25, %c0_26] : memref<1x1x32xf32, #tpu.memory_space<vmem>>, vector<1x1x32xf32>
    %52 = vector.shape_cast %51 : vector<1x1x32xf32> to vector<1x32xf32>
    %cst_27 = arith.constant dense<0.000000e+00> : vector<8xf32>
    %53 = vector.multi_reduction <add>, %48, %cst_27 [1] : vector<8x32xf32> to vector<8xf32>
    %54 = vector.shape_cast %53 : vector<8xf32> to vector<8x1xf32>
    %cst_28 = arith.constant 3.200000e+01 : f32
    %55 = vector.broadcast %cst_28 : f32 to vector<8x1xf32>
    %56 = arith.divf %54, %55 : vector<8x1xf32>
    %57 = vector.broadcast %56 : vector<8x1xf32> to vector<8x32xf32>
    %58 = arith.subf %48, %57 : vector<8x32xf32>
    %59 = arith.mulf %58, %58 : vector<8x32xf32>
    %cst_29 = arith.constant dense<0.000000e+00> : vector<8xf32>
    %60 = vector.multi_reduction <add>, %59, %cst_29 [1] : vector<8x32xf32> to vector<8xf32>
    %61 = vector.shape_cast %60 : vector<8xf32> to vector<8x1xf32>
    %cst_30 = arith.constant 3.200000e+01 : f32
    %62 = vector.broadcast %cst_30 : f32 to vector<8x1xf32>
    %63 = arith.divf %61, %62 : vector<8x1xf32>
    %64 = vector.broadcast %56 : vector<8x1xf32> to vector<8x32xf32>
    %65 = arith.subf %48, %64 : vector<8x32xf32>
    %cst_31 = arith.constant 9.99999997E-7 : f32
    %66 = vector.broadcast %cst_31 : f32 to vector<8x1xf32>
    %67 = arith.addf %63, %66 : vector<8x1xf32>
    %68 = math.rsqrt %67 : vector<8x1xf32>
    %69 = vector.broadcast %68 : vector<8x1xf32> to vector<8x32xf32>
    %70 = arith.mulf %65, %69 : vector<8x32xf32>
    %71 = vector.broadcast %50 : vector<1x32xf32> to vector<8x32xf32>
    %72 = arith.mulf %70, %71 : vector<8x32xf32>
    %73 = vector.broadcast %52 : vector<1x32xf32> to vector<8x32xf32>
    %74 = arith.addf %72, %73 : vector<8x32xf32>
    %c0_32 = arith.constant 0 : index
    %c0_33 = arith.constant 0 : index
    %c0_34 = arith.constant 0 : index
    %75 = vector.load %arg8[%c0_32, %c0_33, %c0_34] : memref<1x32x64xbf16, #tpu.memory_space<vmem>>, vector<1x32x64xbf16>
    %76 = vector.shape_cast %75 : vector<1x32x64xbf16> to vector<32x64xbf16>
    %77 = arith.extf %76 : vector<32x64xbf16> to vector<32x64xf32>
    %cst_35 = arith.constant dense<0.000000e+00> : vector<8x64xf32>
    %78 = tpu.matmul %74, %77, %cst_35 {dimension_numbers = #tpu.dot_dimension_numbers<[1], [0], [0], [1], [0, 0, 1, 1], [], []>} : vector<8x32xf32>, vector<32x64xf32>, vector<8x64xf32> -> vector<8x64xf32>
    %c0_36 = arith.constant 0 : index
    %c0_37 = arith.constant 0 : index
    %c0_38 = arith.constant 0 : index
    %79 = vector.load %arg9[%c0_36, %c0_37, %c0_38] : memref<1x1x64xf32, #tpu.memory_space<vmem>>, vector<1x1x64xf32>
    %80 = vector.shape_cast %79 : vector<1x1x64xf32> to vector<1x64xf32>
    %81 = vector.broadcast %80 : vector<1x64xf32> to vector<8x64xf32>
    %82 = arith.addf %78, %81 : vector<8x64xf32>
    %cst_39 = arith.constant 0.000000e+00 : f32
    %83 = vector.broadcast %cst_39 : f32 to vector<8x64xf32>
    %84 = arith.maximumf %82, %83 : vector<8x64xf32>
    %c0_40 = arith.constant 0 : index
    %c0_41 = arith.constant 0 : index
    %c0_42 = arith.constant 0 : index
    %85 = vector.load %arg10[%c0_40, %c0_41, %c0_42] : memref<1x64x32xbf16, #tpu.memory_space<vmem>>, vector<1x64x32xbf16>
    %86 = vector.shape_cast %85 : vector<1x64x32xbf16> to vector<64x32xbf16>
    %87 = arith.extf %86 : vector<64x32xbf16> to vector<64x32xf32>
    %cst_43 = arith.constant dense<0.000000e+00> : vector<8x32xf32>
    %88 = tpu.matmul %84, %87, %cst_43 {dimension_numbers = #tpu.dot_dimension_numbers<[1], [0], [0], [1], [0, 0, 1, 1], [], []>} : vector<8x64xf32>, vector<64x32xf32>, vector<8x32xf32> -> vector<8x32xf32>
    %c0_44 = arith.constant 0 : index
    %c0_45 = arith.constant 0 : index
    %c0_46 = arith.constant 0 : index
    %89 = vector.load %arg11[%c0_44, %c0_45, %c0_46] : memref<1x1x32xf32, #tpu.memory_space<vmem>>, vector<1x1x32xf32>
    %90 = vector.shape_cast %89 : vector<1x1x32xf32> to vector<1x32xf32>
    %91 = vector.broadcast %90 : vector<1x32xf32> to vector<8x32xf32>
    %92 = arith.addf %88, %91 : vector<8x32xf32>
    %93 = arith.addf %92, %74 : vector<8x32xf32>
    %c0_47 = arith.constant 0 : index
    %c0_48 = arith.constant 0 : index
    %c0_49 = arith.constant 0 : index
    %94 = vector.load %arg12[%c0_47, %c0_48, %c0_49] : memref<1x1x32xf32, #tpu.memory_space<vmem>>, vector<1x1x32xf32>
    %95 = vector.shape_cast %94 : vector<1x1x32xf32> to vector<1x32xf32>
    %c0_50 = arith.constant 0 : index
    %c0_51 = arith.constant 0 : index
    %c0_52 = arith.constant 0 : index
    %96 = vector.load %arg13[%c0_50, %c0_51, %c0_52] : memref<1x1x32xf32, #tpu.memory_space<vmem>>, vector<1x1x32xf32>
    %97 = vector.shape_cast %96 : vector<1x1x32xf32> to vector<1x32xf32>
    %cst_53 = arith.constant dense<0.000000e+00> : vector<8xf32>
    %98 = vector.multi_reduction <add>, %93, %cst_53 [1] : vector<8x32xf32> to vector<8xf32>
    %99 = vector.shape_cast %98 : vector<8xf32> to vector<8x1xf32>
    %cst_54 = arith.constant 3.200000e+01 : f32
    %100 = vector.broadcast %cst_54 : f32 to vector<8x1xf32>
    %101 = arith.divf %99, %100 : vector<8x1xf32>
    %102 = vector.broadcast %101 : vector<8x1xf32> to vector<8x32xf32>
    %103 = arith.subf %93, %102 : vector<8x32xf32>
    %104 = arith.mulf %103, %103 : vector<8x32xf32>
    %cst_55 = arith.constant dense<0.000000e+00> : vector<8xf32>
    %105 = vector.multi_reduction <add>, %104, %cst_55 [1] : vector<8x32xf32> to vector<8xf32>
    %106 = vector.shape_cast %105 : vector<8xf32> to vector<8x1xf32>
    %cst_56 = arith.constant 3.200000e+01 : f32
    %107 = vector.broadcast %cst_56 : f32 to vector<8x1xf32>
    %108 = arith.divf %106, %107 : vector<8x1xf32>
    %109 = vector.broadcast %101 : vector<8x1xf32> to vector<8x32xf32>
    %110 = arith.subf %93, %109 : vector<8x32xf32>
    %cst_57 = arith.constant 9.99999997E-7 : f32
    %111 = vector.broadcast %cst_57 : f32 to vector<8x1xf32>
    %112 = arith.addf %108, %111 : vector<8x1xf32>
    %113 = math.rsqrt %112 : vector<8x1xf32>
    %114 = vector.broadcast %113 : vector<8x1xf32> to vector<8x32xf32>
    %115 = arith.mulf %110, %114 : vector<8x32xf32>
    %116 = vector.broadcast %95 : vector<1x32xf32> to vector<8x32xf32>
    %117 = arith.mulf %115, %116 : vector<8x32xf32>
    %118 = vector.broadcast %97 : vector<1x32xf32> to vector<8x32xf32>
    %119 = arith.addf %117, %118 : vector<8x32xf32>
    %c1_i32 = arith.constant 1 : i32
    %120 = arith.cmpi eq, %arg1, %c1_i32 : i32
    %121 = arith.extui %120 : i1 to i32
    %c0_i32_58 = arith.constant 0 : i32
    %122 = arith.cmpi ne, %121, %c0_i32_58 : i32
    scf.if %122 {
      %c0_60 = arith.constant 0 : index
      %c0_61 = arith.constant 0 : index
      %126 = vector.load %arg14[%c0_60, %c0_61] : memref<1x32xf32, #tpu.memory_space<vmem>>, vector<1x32xf32>
      %c0_62 = arith.constant 0 : index
      %c0_63 = arith.constant 0 : index
      %127 = vector.load %arg15[%c0_62, %c0_63] : memref<1x32xf32, #tpu.memory_space<vmem>>, vector<1x32xf32>
      %cst_64 = arith.constant dense<0.000000e+00> : vector<8xf32>
      %128 = vector.multi_reduction <add>, %119, %cst_64 [1] : vector<8x32xf32> to vector<8xf32>
      %129 = vector.shape_cast %128 : vector<8xf32> to vector<8x1xf32>
      %cst_65 = arith.constant 3.200000e+01 : f32
      %130 = vector.broadcast %cst_65 : f32 to vector<8x1xf32>
      %131 = arith.divf %129, %130 : vector<8x1xf32>
      %132 = vector.broadcast %131 : vector<8x1xf32> to vector<8x32xf32>
      %133 = arith.subf %119, %132 : vector<8x32xf32>
      %134 = arith.mulf %133, %133 : vector<8x32xf32>
      %cst_66 = arith.constant dense<0.000000e+00> : vector<8xf32>
      %135 = vector.multi_reduction <add>, %134, %cst_66 [1] : vector<8x32xf32> to vector<8xf32>
      %136 = vector.shape_cast %135 : vector<8xf32> to vector<8x1xf32>
      %cst_67 = arith.constant 3.200000e+01 : f32
      %137 = vector.broadcast %cst_67 : f32 to vector<8x1xf32>
      %138 = arith.divf %136, %137 : vector<8x1xf32>
      %139 = vector.broadcast %131 : vector<8x1xf32> to vector<8x32xf32>
      %140 = arith.subf %119, %139 : vector<8x32xf32>
      %cst_68 = arith.constant 9.99999997E-7 : f32
      %141 = vector.broadcast %cst_68 : f32 to vector<8x1xf32>
      %142 = arith.addf %138, %141 : vector<8x1xf32>
      %143 = math.rsqrt %142 : vector<8x1xf32>
      %144 = vector.broadcast %143 : vector<8x1xf32> to vector<8x32xf32>
      %145 = arith.mulf %140, %144 : vector<8x32xf32>
      %146 = vector.broadcast %126 : vector<1x32xf32> to vector<8x32xf32>
      %147 = arith.mulf %145, %146 : vector<8x32xf32>
      %148 = vector.broadcast %127 : vector<1x32xf32> to vector<8x32xf32>
      %149 = arith.addf %147, %148 : vector<8x32xf32>
      %c0_69 = arith.constant 0 : index
      %c0_70 = arith.constant 0 : index
      %c0_71 = arith.constant 0 : index
      %150 = vector.load %arg16[%c0_69, %c0_70, %c0_71] : memref<1x8x32xf32, #tpu.memory_space<vmem>>, vector<1x8x32xf32>
      %151 = vector.shape_cast %150 : vector<1x8x32xf32> to vector<8x32xf32>
      %152 = vector.shape_cast %149 : vector<8x32xf32> to vector<1x8x32xf32>
      tpu.vector_store %arg16[%c0_69, %c0_70, %c0_71], %152 {strides = array<i32>} : memref<1x8x32xf32, #tpu.memory_space<vmem>>, vector<1x8x32xf32>,
    } else {
    }
    %true = arith.constant true
    %123 = arith.xori %120, %true : i1
    %124 = arith.extui %123 : i1 to i32
    %c0_i32_59 = arith.constant 0 : i32
    %125 = arith.cmpi ne, %124, %c0_i32_59 : i32
    scf.if %125 {
      %c0_60 = arith.constant 0 : index
      %c0_61 = arith.constant 0 : index
      %c0_62 = arith.constant 0 : index
      %126 = vector.load %arg16[%c0_60, %c0_61, %c0_62] : memref<1x8x32xf32, #tpu.memory_space<vmem>>, vector<1x8x32xf32>
      %127 = vector.shape_cast %126 : vector<1x8x32xf32> to vector<8x32xf32>
      %128 = vector.shape_cast %119 : vector<8x32xf32> to vector<1x8x32xf32>
      tpu.vector_store %arg16[%c0_60, %c0_61, %c0_62], %128 {strides = array<i32>} : memref<1x8x32xf32, #tpu.memory_space<vmem>>, vector<1x8x32xf32>,
    } else {
    }
    return
  }
  func.func @transform_0(%arg0: i32, %arg1: i32) -> (i32, i32, i32) {
    %c0_i32 = arith.constant 0 : i32
    %c0_i32_0 = arith.constant 0 : i32
    %c0_i32_1 = arith.constant 0 : i32
    return %arg0, %c0_i32, %c0_i32_0 : i32, i32, i32
  }
  func.func @transform_1(%arg0: i32, %arg1: i32) -> (i32, i32, i32) {
    %c0_i32 = arith.constant 0 : i32
    %c0_i32_0 = arith.constant 0 : i32
    %c0_i32_1 = arith.constant 0 : i32
    return %arg0, %c0_i32, %c0_i32_0 : i32, i32, i32
  }
  func.func @transform_2(%arg0: i32, %arg1: i32) -> (i32, i32, i32) {
    %c0_i32 = arith.constant 0 : i32
    %c0_i32_0 = arith.constant 0 : i32
    %c0_i32_1 = arith.constant 0 : i32
    return %arg1, %c0_i32, %c0_i32_0 : i32, i32, i32
  }
  func.func @transform_3(%arg0: i32, %arg1: i32) -> (i32, i32, i32) {
    %c0_i32 = arith.constant 0 : i32
    %c0_i32_0 = arith.constant 0 : i32
    %c0_i32_1 = arith.constant 0 : i32
    return %arg1, %c0_i32, %c0_i32_0 : i32, i32, i32
  }
  func.func @transform_4(%arg0: i32, %arg1: i32) -> (i32, i32, i32) {
    %c0_i32 = arith.constant 0 : i32
    %c0_i32_0 = arith.constant 0 : i32
    %c0_i32_1 = arith.constant 0 : i32
    return %arg1, %c0_i32, %c0_i32_0 : i32, i32, i32
  }
  func.func @transform_5(%arg0: i32, %arg1: i32) -> (i32, i32, i32) {
    %c0_i32 = arith.constant 0 : i32
    %c0_i32_0 = arith.constant 0 : i32
    %c0_i32_1 = arith.constant 0 : i32
    return %arg1, %c0_i32, %c0_i32_0 : i32, i32, i32
  }
  func.func @transform_6(%arg0: i32, %arg1: i32) -> (i32, i32, i32) {
    %c0_i32 = arith.constant 0 : i32
    %c0_i32_0 = arith.constant 0 : i32
    %c0_i32_1 = arith.constant 0 : i32
    return %arg1, %c0_i32, %c0_i32_0 : i32, i32, i32
  }
  func.func @transform_7(%arg0: i32, %arg1: i32) -> (i32, i32, i32) {
    %c0_i32 = arith.constant 0 : i32
    %c0_i32_0 = arith.constant 0 : i32
    %c0_i32_1 = arith.constant 0 : i32
    return %arg1, %c0_i32, %c0_i32_0 : i32, i32, i32
  }
  func.func @transform_8(%arg0: i32, %arg1: i32) -> (i32, i32, i32) {
    %c0_i32 = arith.constant 0 : i32
    %c0_i32_0 = arith.constant 0 : i32
    %c0_i32_1 = arith.constant 0 : i32
    return %arg1, %c0_i32, %c0_i32_0 : i32, i32, i32
  }
  func.func @transform_9(%arg0: i32, %arg1: i32) -> (i32, i32, i32) {
    %c0_i32 = arith.constant 0 : i32
    %c0_i32_0 = arith.constant 0 : i32
    %c0_i32_1 = arith.constant 0 : i32
    return %arg1, %c0_i32, %c0_i32_0 : i32, i32, i32
  }
  func.func @transform_10(%arg0: i32, %arg1: i32) -> (i32, i32, i32) {
    %c0_i32 = arith.constant 0 : i32
    %c0_i32_0 = arith.constant 0 : i32
    %c0_i32_1 = arith.constant 0 : i32
    return %arg1, %c0_i32, %c0_i32_0 : i32, i32, i32
  }
  func.func @transform_11(%arg0: i32, %arg1: i32) -> (i32, i32, i32) {
    %c0_i32 = arith.constant 0 : i32
    %c0_i32_0 = arith.constant 0 : i32
    %c0_i32_1 = arith.constant 0 : i32
    return %arg1, %c0_i32, %c0_i32_0 : i32, i32, i32
  }
  func.func @transform_12(%arg0: i32, %arg1: i32) -> (i32, i32) {
    %c0_i32 = arith.constant 0 : i32
    %c0_i32_0 = arith.constant 0 : i32
    %c0_i32_1 = arith.constant 0 : i32
    return %c0_i32, %c0_i32_0 : i32, i32
  }
  func.func @transform_13(%arg0: i32, %arg1: i32) -> (i32, i32) {
    %c0_i32 = arith.constant 0 : i32
    %c0_i32_0 = arith.constant 0 : i32
    %c0_i32_1 = arith.constant 0 : i32
    return %c0_i32, %c0_i32_0 : i32, i32
  }
  func.func @transform_14(%arg0: i32, %arg1: i32) -> (i32, i32, i32) {
    %c0_i32 = arith.constant 0 : i32
    %c0_i32_0 = arith.constant 0 : i32
    %c0_i32_1 = arith.constant 0 : i32
    return %arg0, %c0_i32, %c0_i32_0 : i32, i32, i32
  }
}

</mosaic_0001>

<llo_original>
// kernel: tpu_custom_call.1
$region0: #{tpu_custom_call.1}
  #allocation0 [shape = 'u32[]', space=smem, size = 0x4, offset = 0x4, fixed_abs, tag = 'smem constant byte address 0x4 - core index']
  #allocation1 [shape = 'u32[72,128]{1,0:T(1,128)}', space=vmem, size = 0x9000, scoped, tag = 'internal scratch']
  %s0 = inlined_call_operand.hbm [shape: f32[2,8,32], index: 0, kind: input, shape index: {}]
  %s1 = inlined_call_operand.hbm [shape: f32[2,1,8], index: 1, kind: input, shape index: {}]
  %s2 = inlined_call_operand.vmem [shape: bf16[2,32,96], index: 2, kind: input, shape index: {}]
  %s3 = inlined_call_operand.vmem [shape: bf16[2,32,32], index: 3, kind: input, shape index: {}]
  %s4 = inlined_call_operand.vmem [shape: f32[2,1,32], index: 4, kind: input, shape index: {}]
  %s5 = inlined_call_operand.hbm [shape: f32[2,1,32], index: 5, kind: input, shape index: {}]
  %s6 = inlined_call_operand.vmem [shape: bf16[2,32,64], index: 6, kind: input, shape index: {}]
  %s7 = inlined_call_operand.vmem [shape: f32[2,1,64], index: 7, kind: input, shape index: {}]
  %s8 = inlined_call_operand.vmem [shape: bf16[2,64,32], index: 8, kind: input, shape index: {}]
  %s9 = inlined_call_operand.vmem [shape: f32[2,1,32], index: 9, kind: input, shape index: {}]
  %s10 = inlined_call_operand.vmem [shape: f32[2,1,32], index: 10, kind: input, shape index: {}]
  %s11 = inlined_call_operand.hbm [shape: f32[2,1,32], index: 11, kind: input, shape index: {}]
  %s12 = inlined_call_operand.vmem [shape: f32[1,32], index: 12, kind: input, shape index: {}]
  %s13 = inlined_call_operand.vmem [shape: f32[1,32], index: 13, kind: input, shape index: {}]
  %s14 = inlined_call_operand.hbm [shape: f32[2,8,32], index: 14, kind: output, shape index: {}]
  %s15 = sld [smem:[#allocation0]]
  $region117: #{tpu_custom_call.1} parent=0
    _
  %s17 = ssub.s32 1, %s15
  %s18 = scalar_select 0, %s17, %s15
  $region1: #{tpu_custom_call.1} parent=0
    #allocation2 [shape = 'u8[8192]{0}', space=vmem, size = 0x2000, scoped, tag = 'input window, operand 0']
    #allocation3 [shape = 's32[2]{0}', space=sflag, size = 0x8, scoped, tag = 'scoped memory for tpu_custom_call.1']
    #allocation4 [shape = 's32[2]{0}', space=sflag, size = 0x8, scoped, tag = 'scoped memory for tpu_custom_call.1']
    #allocation5 [shape = 'u8[1024]{0}', space=vmem, size = 0x400, scoped, tag = 'input window, operand 1']
    #allocation6 [shape = 's32[2]{0}', space=sflag, size = 0x8, scoped, tag = 'scoped memory for tpu_custom_call.1']
    #allocation7 [shape = 'u8[1024]{0}', space=vmem, size = 0x400, scoped, tag = 'input window, operand 5']
    #allocation8 [shape = 'u8[1024]{0}', space=vmem, size = 0x400, scoped, tag = 'input window, operand 11']
    #allocation9 [shape = 's32[2]{0}', space=sflag, size = 0x8, scoped, tag = 'scoped memory for tpu_custom_call.1']
    #allocation10 [shape = 'u8[8192]{0}', space=vmem, size = 0x2000, scoped, tag = 'output window, operand 0']
    %19 = vsyncpa [#allocation3], 0
    %s20 = scalar_lea.sflag [#allocation3], 1
    %21 = vsyncpa %s20, 0
    %22 = vsyncpa [#allocation6], 0
    %s23 = scalar_lea.sflag [#allocation6], 1
    %24 = vsyncpa %s23, 0
    %25 = vsyncpa [#allocation9], 0
    %s26 = scalar_lea.sflag [#allocation9], 1
    %27 = vsyncpa %s26, 0
    %28 = vsyncpa [#allocation4], 0
    %s29 = scalar_lea.sflag [#allocation4], 1
    %30 = vsyncpa %s29, 0
    loop: start=0, step=1, limit=6
    $region2: #{tpu_custom_call.1} parent=1 // loop_pre_header
      _
    $region3: #{tpu_custom_call.1} parent=1 // loop_header
      %s32 = sphi 0, %s36
      %p33 = scmp.ge.s32.totalorder %s32, 6
      %s39 = sphi 0, %s51
      %s40 = sphi 0, %s47
      %s41 = sphi 0, %s39
      %s42 = sphi 0, %s40
      %s43 = sphi 0, %s41
      %s44 = sphi 0, %s42
      %s54 = sphi 0, %s56
      %s57 = sphi 0, %s54
      %s58 = sphi 0, %s57
      %s74 = sphi 0, %s58
      %s80 = sphi 0, %s82
      %s83 = sphi 0, %s80
      %s84 = sphi 0, %s83
      %s100 = sphi 0, %s84
      %s106 = sphi 0, %s108
      %s109 = sphi 0, %s106
      %s110 = sphi 0, %s109
      %s126 = sphi 0, %s110
      %s132 = sphi 0, %s134
      %s135 = sphi 0, %s132
      %s136 = sphi 0, %s135
      %s152 = sphi 0, %s136
      %s158 = sphi 0, %s160
      %s161 = sphi 0, %s158
      %s162 = sphi 0, %s161
      %s178 = sphi 0, %s162
      %s184 = sphi 0, %s186
      %s187 = sphi 0, %s184
      %s188 = sphi 0, %s187
      %s204 = sphi 0, %s188
      %s210 = sphi 0, %s212
      %s213 = sphi 0, %s210
      %s214 = sphi 0, %s213
      %s230 = sphi 0, %s214
      %s236 = sphi 0, %s238
      %s239 = sphi 0, %s236
      %s240 = sphi 0, %s239
      %s256 = sphi 0, %s240
      %s262 = sphi 0, %s264
      %s265 = sphi 0, %s262
      %s266 = sphi 0, %s265
      %s282 = sphi 0, %s266
      %s288 = sphi 0, %s290
      %s291 = sphi 0, %s288
      %s292 = sphi 0, %s291
      %s308 = sphi 0, %s292
      %s314 = sphi 0, %s316
      %s317 = sphi 0, %s314
      %s318 = sphi 0, %s317
      %s334 = sphi 0, %s318
      %s340 = sphi 0, %s342
      %s343 = sphi 0, %s340
      %s344 = sphi 0, %s343
      %s360 = sphi 0, %s344
      %s364 = sphi 0, %s364
      %s366 = sphi 0, %s364
      %s367 = sphi 0, %s366
      %s381 = sphi 0, %s367
      %s385 = sphi 0, %s385
      %s387 = sphi 0, %s385
      %s388 = sphi 0, %s387
      %s402 = sphi 0, %s388
      %s408 = sphi 0, %s410
      %s411 = sphi 0, %s408
      %s412 = sphi 0, %s411
      %s428 = sphi 0, %s412
    $region4: #{tpu_custom_call.1} parent=1 // loop_header_branch
      %35 = sbr.rel (%p33) target = $region8
    $region5: #{tpu_custom_call.1} parent=1 // loop_body
      %s37 = ssub.s32 %s32, 1
      %s38 = ssub.s32 %s32, 2
      %s45 = sadd.s32 1, %s40
      %p46 = scmp.ge.s32.totalorder %s45, 2
      %s47 = scalar_select %p46, 0, %s45
      %s48 = sadd.s32 1, %s39
      %s49 = scalar_select %p46, %s48, %s39
      %p50 = scmp.ge.s32.totalorder %s49, 2
      %s51 = scalar_select %p50, 0, %s49
      %s52 = ssub.s32 %s39, %s51
      %p53 = scmp.eq.s32.totalorder %s52, 0
      %s55 = sadd.s32 %s54, 1
      %s56 = scalar_select %p53, %s54, %s55
      %p59 = pneg %p53
      %p60 = scmp.eq.s32.totalorder %s32, 3
      %p61 = por %p59, %p60
      %p62 = scmp.ne.s32.totalorder %s54, %s57
      %p63 = scmp.eq.s32.totalorder %s32, 0
      %p64 = por %p62, %p63
      %p65 = scmp.ne.s32.totalorder %s54, %s57
      %p66 = scmp.eq.s32.totalorder %s37, 3
      %p67 = por %p65, %p66
      %p68 = scmp.ne.s32.totalorder %s57, %s58
      %p69 = scmp.eq.s32.totalorder %s37, 0
      %p70 = por %p68, %p69
      %p71 = scmp.ne.s32.totalorder %s57, %s58
      %p72 = scmp.eq.s32.totalorder %s38, 3
      %p73 = por %p71, %p72
      %p75 = scmp.ne.s32.totalorder %s58, %s74
      %p76 = scmp.eq.s32.totalorder %s38, 0
      %p77 = por %p75, %p76
      %s78 = ssub.s32 %s39, %s51
      %p79 = scmp.eq.s32.totalorder %s78, 0
      %s81 = sadd.s32 %s80, 1
      %s82 = scalar_select %p79, %s80, %s81
      %p85 = pneg %p79
      %p86 = scmp.eq.s32.totalorder %s32, 3
      %p87 = por %p85, %p86
      %p88 = scmp.ne.s32.totalorder %s80, %s83
      %p89 = scmp.eq.s32.totalorder %s32, 0
      %p90 = por %p88, %p89
      %p91 = scmp.ne.s32.totalorder %s80, %s83
      %p92 = scmp.eq.s32.totalorder %s37, 3
      %p93 = por %p91, %p92
      %p94 = scmp.ne.s32.totalorder %s83, %s84
      %p95 = scmp.eq.s32.totalorder %s37, 0
      %p96 = por %p94, %p95
      %p97 = scmp.ne.s32.totalorder %s83, %s84
      %p98 = scmp.eq.s32.totalorder %s38, 3
      %p99 = por %p97, %p98
      %p101 = scmp.ne.s32.totalorder %s84, %s100
      %p102 = scmp.eq.s32.totalorder %s38, 0
      %p103 = por %p101, %p102
      %s104 = ssub.s32 %s40, %s47
      %p105 = scmp.eq.s32.totalorder %s104, 0
      %s107 = sadd.s32 %s106, 1
      %s108 = scalar_select %p105, %s106, %s107
      %p111 = pneg %p105
      %p112 = scmp.eq.s32.totalorder %s32, 3
      %p113 = por %p111, %p112
      %p114 = scmp.ne.s32.totalorder %s106, %s109
      %p115 = scmp.eq.s32.totalorder %s32, 0
      %p116 = por %p114, %p115
      %p117 = scmp.ne.s32.totalorder %s106, %s109
      %p118 = scmp.eq.s32.totalorder %s37, 3
      %p119 = por %p117, %p118
      %p120 = scmp.ne.s32.totalorder %s109, %s110
      %p121 = scmp.eq.s32.totalorder %s37, 0
      %p122 = por %p120, %p121
      %p123 = scmp.ne.s32.totalorder %s109, %s110
      %p124 = scmp.eq.s32.totalorder %s38, 3
      %p125 = por %p123, %p124
      %p127 = scmp.ne.s32.totalorder %s110, %s126
      %p128 = scmp.eq.s32.totalorder %s38, 0
      %p129 = por %p127, %p128
      %s130 = ssub.s32 %s40, %s47
      %p131 = scmp.eq.s32.totalorder %s130, 0
      %s133 = sadd.s32 %s132, 1
      %s134 = scalar_select %p131, %s132, %s133
      %p137 = pneg %p131
      %p138 = scmp.eq.s32.totalorder %s32, 3
      %p139 = por %p137, %p138
      %p140 = scmp.ne.s32.totalorder %s132, %s135
      %p141 = scmp.eq.s32.totalorder %s32, 0
      %p142 = por %p140, %p141
      %p143 = scmp.ne.s32.totalorder %s132, %s135
      %p144 = scmp.eq.s32.totalorder %s37, 3
      %p145 = por %p143, %p144
      %p146 = scmp.ne.s32.totalorder %s135, %s136
      %p147 = scmp.eq.s32.totalorder %s37, 0
      %p148 = por %p146, %p147
      %p149 = scmp.ne.s32.totalorder %s135, %s136
      %p150 = scmp.eq.s32.totalorder %s38, 3
      %p151 = por %p149, %p150
      %p153 = scmp.ne.s32.totalorder %s136, %s152
      %p154 = scmp.eq.s32.totalorder %s38, 0
      %p155 = por %p153, %p154
      %s156 = ssub.s32 %s40, %s47
      %p157 = scmp.eq.s32.totalorder %s156, 0
      %s159 = sadd.s32 %s158, 1
      %s160 = scalar_select %p157, %s158, %s159
      %p163 = pneg %p157
      %p164 = scmp.eq.s32.totalorder %s32, 3
      %p165 = por %p163, %p164
      %p166 = scmp.ne.s32.totalorder %s158, %s161
      %p167 = scmp.eq.s32.totalorder %s32, 0
      %p168 = por %p166, %p167
      %p169 = scmp.ne.s32.totalorder %s158, %s161
      %p170 = scmp.eq.s32.totalorder %s37, 3
      %p171 = por %p169, %p170
      %p172 = scmp.ne.s32.totalorder %s161, %s162
      %p173 = scmp.eq.s32.totalorder %s37, 0
      %p174 = por %p172, %p173
      %p175 = scmp.ne.s32.totalorder %s161, %s162
      %p176 = scmp.eq.s32.totalorder %s38, 3
      %p177 = por %p175, %p176
      %p179 = scmp.ne.s32.totalorder %s162, %s178
      %p180 = scmp.eq.s32.totalorder %s38, 0
      %p181 = por %p179, %p180
      %s182 = ssub.s32 %s40, %s47
      %p183 = scmp.eq.s32.totalorder %s182, 0
      %s185 = sadd.s32 %s184, 1
      %s186 = scalar_select %p183, %s184, %s185
      %p189 = pneg %p183
      %p190 = scmp.eq.s32.totalorder %s32, 3
      %p191 = por %p189, %p190
      %p192 = scmp.ne.s32.totalorder %s184, %s187
      %p193 = scmp.eq.s32.totalorder %s32, 0
      %p194 = por %p192, %p193
      %p195 = scmp.ne.s32.totalorder %s184, %s187
      %p196 = scmp.eq.s32.totalorder %s37, 3
      %p197 = por %p195, %p196
      %p198 = scmp.ne.s32.totalorder %s187, %s188
      %p199 = scmp.eq.s32.totalorder %s37, 0
      %p200 = por %p198, %p199
      %p201 = scmp.ne.s32.totalorder %s187, %s188
      %p202 = scmp.eq.s32.totalorder %s38, 3
      %p203 = por %p201, %p202
      %p205 = scmp.ne.s32.totalorder %s188, %s204
      %p206 = scmp.eq.s32.totalorder %s38, 0
      %p207 = por %p205, %p206
      %s208 = ssub.s32 %s40, %s47
      %p209 = scmp.eq.s32.totalorder %s208, 0
      %s211 = sadd.s32 %s210, 1
      %s212 = scalar_select %p209, %s210, %s211
      %p215 = pneg %p209
      %p216 = scmp.eq.s32.totalorder %s32, 3
      %p217 = por %p215, %p216
      %p218 = scmp.ne.s32.totalorder %s210, %s213
      %p219 = scmp.eq.s32.totalorder %s32, 0
      %p220 = por %p218, %p219
      %p221 = scmp.ne.s32.totalorder %s210, %s213
      %p222 = scmp.eq.s32.totalorder %s37, 3
      %p223 = por %p221, %p222
      %p224 = scmp.ne.s32.totalorder %s213, %s214
      %p225 = scmp.eq.s32.totalorder %s37, 0
      %p226 = por %p224, %p225
      %p227 = scmp.ne.s32.totalorder %s213, %s214
      %p228 = scmp.eq.s32.totalorder %s38, 3
      %p229 = por %p227, %p228
      %p231 = scmp.ne.s32.totalorder %s214, %s230
      %p232 = scmp.eq.s32.totalorder %s38, 0
      %p233 = por %p231, %p232
      %s234 = ssub.s32 %s40, %s47
      %p235 = scmp.eq.s32.totalorder %s234, 0
      %s237 = sadd.s32 %s236, 1
      %s238 = scalar_select %p235, %s236, %s237
      %p241 = pneg %p235
      %p242 = scmp.eq.s32.totalorder %s32, 3
      %p243 = por %p241, %p242
      %p244 = scmp.ne.s32.totalorder %s236, %s239
      %p245 = scmp.eq.s32.totalorder %s32, 0
      %p246 = por %p244, %p245
      %p247 = scmp.ne.s32.totalorder %s236, %s239
      %p248 = scmp.eq.s32.totalorder %s37, 3
      %p249 = por %p247, %p248
      %p250 = scmp.ne.s32.totalorder %s239, %s240
      %p251 = scmp.eq.s32.totalorder %s37, 0
      %p252 = por %p250, %p251
      %p253 = scmp.ne.s32.totalorder %s239, %s240
      %p254 = scmp.eq.s32.totalorder %s38, 3
      %p255 = por %p253, %p254
      %p257 = scmp.ne.s32.totalorder %s240, %s256
      %p258 = scmp.eq.s32.totalorder %s38, 0
      %p259 = por %p257, %p258
      %s260 = ssub.s32 %s40, %s47
      %p261 = scmp.eq.s32.totalorder %s260, 0
      %s263 = sadd.s32 %s262, 1
      %s264 = scalar_select %p261, %s262, %s263
      %p267 = pneg %p261
      %p268 = scmp.eq.s32.totalorder %s32, 3
      %p269 = por %p267, %p268
      %p270 = scmp.ne.s32.totalorder %s262, %s265
      %p271 = scmp.eq.s32.totalorder %s32, 0
      %p272 = por %p270, %p271
      %p273 = scmp.ne.s32.totalorder %s262, %s265
      %p274 = scmp.eq.s32.totalorder %s37, 3
      %p275 = por %p273, %p274
      %p276 = scmp.ne.s32.totalorder %s265, %s266
      %p277 = scmp.eq.s32.totalorder %s37, 0
      %p278 = por %p276, %p277
      %p279 = scmp.ne.s32.totalorder %s265, %s266
      %p280 = scmp.eq.s32.totalorder %s38, 3
      %p281 = por %p279, %p280
      %p283 = scmp.ne.s32.totalorder %s266, %s282
      %p284 = scmp.eq.s32.totalorder %s38, 0
      %p285 = por %p283, %p284
      %s286 = ssub.s32 %s40, %s47
      %p287 = scmp.eq.s32.totalorder %s286, 0
      %s289 = sadd.s32 %s288, 1
      %s290 = scalar_select %p287, %s288, %s289
      %p293 = pneg %p287
      %p294 = scmp.eq.s32.totalorder %s32, 3
      %p295 = por %p293, %p294
      %p296 = scmp.ne.s32.totalorder %s288, %s291
      %p297 = scmp.eq.s32.totalorder %s32, 0
      %p298 = por %p296, %p297
      %p299 = scmp.ne.s32.totalorder %s288, %s291
      %p300 = scmp.eq.s32.totalorder %s37, 3
      %p301 = por %p299, %p300
      %p302 = scmp.ne.s32.totalorder %s291, %s292
      %p303 = scmp.eq.s32.totalorder %s37, 0
      %p304 = por %p302, %p303
      %p305 = scmp.ne.s32.totalorder %s291, %s292
      %p306 = scmp.eq.s32.totalorder %s38, 3
      %p307 = por %p305, %p306
      %p309 = scmp.ne.s32.totalorder %s292, %s308
      %p310 = scmp.eq.s32.totalorder %s38, 0
      %p311 = por %p309, %p310
      %s312 = ssub.s32 %s40, %s47
      %p313 = scmp.eq.s32.totalorder %s312, 0
      %s315 = sadd.s32 %s314, 1
      %s316 = scalar_select %p313, %s314, %s315
      %p319 = pneg %p313
      %p320 = scmp.eq.s32.totalorder %s32, 3
      %p321 = por %p319, %p320
      %p322 = scmp.ne.s32.totalorder %s314, %s317
      %p323 = scmp.eq.s32.totalorder %s32, 0
      %p324 = por %p322, %p323
      %p325 = scmp.ne.s32.totalorder %s314, %s317
      %p326 = scmp.eq.s32.totalorder %s37, 3
      %p327 = por %p325, %p326
      %p328 = scmp.ne.s32.totalorder %s317, %s318
      %p329 = scmp.eq.s32.totalorder %s37, 0
      %p330 = por %p328, %p329
      %p331 = scmp.ne.s32.totalorder %s317, %s318
      %p332 = scmp.eq.s32.totalorder %s38, 3
      %p333 = por %p331, %p332
      %p335 = scmp.ne.s32.totalorder %s318, %s334
      %p336 = scmp.eq.s32.totalorder %s38, 0
      %p337 = por %p335, %p336
      %s338 = ssub.s32 %s40, %s47
      %p339 = scmp.eq.s32.totalorder %s338, 0
      %s341 = sadd.s32 %s340, 1
      %s342 = scalar_select %p339, %s340, %s341
      %p345 = pneg %p339
      %p346 = scmp.eq.s32.totalorder %s32, 3
      %p347 = por %p345, %p346
      %p348 = scmp.ne.s32.totalorder %s340, %s343
      %p349 = scmp.eq.s32.totalorder %s32, 0
      %p350 = por %p348, %p349
      %p351 = scmp.ne.s32.totalorder %s340, %s343
      %p352 = scmp.eq.s32.totalorder %s37, 3
      %p353 = por %p351, %p352
      %p354 = scmp.ne.s32.totalorder %s343, %s344
      %p355 = scmp.eq.s32.totalorder %s37, 0
      %p356 = por %p354, %p355
      %p357 = scmp.ne.s32.totalorder %s343, %s344
      %p358 = scmp.eq.s32.totalorder %s38, 3
      %p359 = por %p357, %p358
      %p361 = scmp.ne.s32.totalorder %s344, %s360
      %p362 = scmp.eq.s32.totalorder %s38, 0
      %p363 = por %p361, %p362
      %s365 = sadd.s32 %s364, 1
      %p368 = scmp.eq.s32.totalorder %s32, 3
      %p369 = scmp.ne.s32.totalorder %s364, %s366
      %p370 = scmp.eq.s32.totalorder %s32, 0
      %p371 = por %p369, %p370
      %p372 = scmp.ne.s32.totalorder %s364, %s366
      %p373 = scmp.eq.s32.totalorder %s37, 3
      %p374 = por %p372, %p373
      %p375 = scmp.ne.s32.totalorder %s366, %s367
      %p376 = scmp.eq.s32.totalorder %s37, 0
      %p377 = por %p375, %p376
      %p378 = scmp.ne.s32.totalorder %s366, %s367
      %p379 = scmp.eq.s32.totalorder %s38, 3
      %p380 = por %p378, %p379
      %p382 = scmp.ne.s32.totalorder %s367, %s381
      %p383 = scmp.eq.s32.totalorder %s38, 0
      %p384 = por %p382, %p383
      %s386 = sadd.s32 %s385, 1
      %p389 = scmp.eq.s32.totalorder %s32, 3
      %p390 = scmp.ne.s32.totalorder %s385, %s387
      %p391 = scmp.eq.s32.totalorder %s32, 0
      %p392 = por %p390, %p391
      %p393 = scmp.ne.s32.totalorder %s385, %s387
      %p394 = scmp.eq.s32.totalorder %s37, 3
      %p395 = por %p393, %p394
      %p396 = scmp.ne.s32.totalorder %s387, %s388
      %p397 = scmp.eq.s32.totalorder %s37, 0
      %p398 = por %p396, %p397
      %p399 = scmp.ne.s32.totalorder %s387, %s388
      %p400 = scmp.eq.s32.totalorder %s38, 3
      %p401 = por %p399, %p400
      %p403 = scmp.ne.s32.totalorder %s388, %s402
      %p404 = scmp.eq.s32.totalorder %s38, 0
      %p405 = por %p403, %p404
      %s406 = ssub.s32 %s39, %s51
      %p407 = scmp.eq.s32.totalorder %s406, 0
      %s409 = sadd.s32 %s408, 1
      %s410 = scalar_select %p407, %s408, %s409
      %p413 = pneg %p407
      %p414 = scmp.eq.s32.totalorder %s32, 3
      %p415 = por %p413, %p414
      %p416 = scmp.ne.s32.totalorder %s408, %s411
      %p417 = scmp.eq.s32.totalorder %s32, 0
      %p418 = por %p416, %p417
      %p419 = scmp.ne.s32.totalorder %s408, %s411
      %p420 = scmp.eq.s32.totalorder %s37, 3
      %p421 = por %p419, %p420
      %p422 = scmp.ne.s32.totalorder %s411, %s412
      %p423 = scmp.eq.s32.totalorder %s37, 0
      %p424 = por %p422, %p423
      %p425 = scmp.ne.s32.totalorder %s411, %s412
      %p426 = scmp.eq.s32.totalorder %s38, 3
      %p427 = por %p425, %p426
      %p429 = scmp.ne.s32.totalorder %s412, %s428
      %p430 = scmp.eq.s32.totalorder %s38, 0
      %p431 = por %p429, %p430
      %p432 = scmp.le.s32.totalorder 1, %s32
      %p433 = scmp.lt.s32.totalorder %s32, 5
      %p434 = pnand %p432, %p433
      %p435 = pneg %p434
      // Predicated region
      $region9: #{tpu_custom_call.1} parent=5 // pred_check
        _
      $region10: #{tpu_custom_call.1} parent=5 // pred_check_branch
        %437 = sbr.rel (%p434) target = $region12
      $region11: #{tpu_custom_call.1} parent=5 // pred_region
        %s438 = ssub.s32 %s32, 1
        // Predicated region
        $region13: #{tpu_custom_call.1} parent=11 // pred_check
          %p439 = pneg %p377
        $region14: #{tpu_custom_call.1} parent=11 // pred_check_branch
          %441 = sbr.rel (%p439) target = $region16
        $region15: #{tpu_custom_call.1} parent=11 // pred_region
          _
        $region16: #{tpu_custom_call.1} parent=11 // pred_fallthru
          _
        // Predicated region
        $region17: #{tpu_custom_call.1} parent=11 // pred_check
          %p442 = pneg %p398
        $region18: #{tpu_custom_call.1} parent=11 // pred_check_branch
          %444 = sbr.rel (%p442) target = $region20
        $region19: #{tpu_custom_call.1} parent=11 // pred_region
          _
        $region20: #{tpu_custom_call.1} parent=11 // pred_fallthru
          _
      $region12: #{tpu_custom_call.1} parent=5 // pred_fallthru
        _
      %p445 = scmp.lt.s32.totalorder %s32, 4
      // Predicated region
      $region21: #{tpu_custom_call.1} parent=5 // pred_check
        %p446 = pneg %p445
      $region22: #{tpu_custom_call.1} parent=5 // pred_check_branch
        %448 = sbr.rel (%p446) target = $region24
      $region23: #{tpu_custom_call.1} parent=5 // pred_region
        // Predicated region
        $region25: #{tpu_custom_call.1} parent=23 // pred_check
          %p449 = pneg %p64
        $region26: #{tpu_custom_call.1} parent=23 // pred_check_branch
          %451 = sbr.rel (%p449) target = $region28
        $region27: #{tpu_custom_call.1} parent=23 // pred_region
          %s452 = sand.u32 %s54, 1
          %s453 = scalar_lea.sflag [#allocation3], %s452
          %s454 = sand.u32 %s54, 1
          %s455 = smul.addr %s454, 8
          %s456 = scalar_lea.vmem [#allocation2], %s455
          %458 = vsyncadd %s453, 0
          %s459 = smul.addr %s39, 8
          %s460 = scalar_lea.hbm %s0, %s459
          %s462 = sshll.u32 %s460, 4
          %s463 = int_to_ptr.hbm [resolvable:$true] %s462
          %s464 = sshll.u32 %s456, 4
          %s465 = int_to_ptr.vmem [resolvable:$true] %s464
          %467 = dma.hbm_to_vmem [thread:$0]  %s463, 128, %s465, %s453
        $region28: #{tpu_custom_call.1} parent=23 // pred_fallthru
          _
        // Predicated region
        $region29: #{tpu_custom_call.1} parent=23 // pred_check
          %p468 = pneg %p90
        $region30: #{tpu_custom_call.1} parent=23 // pred_check_branch
          %470 = sbr.rel (%p468) target = $region32
        $region31: #{tpu_custom_call.1} parent=23 // pred_region
          %s471 = sand.u32 %s32, 1
          %s472 = scalar_lea.sflag [#allocation6], %s471
          %s473 = sand.u32 %s80, 1
          %s474 = scalar_lea.vmem [#allocation5], %s473
          %476 = vsyncadd %s472, 0
          %s477 = scalar_lea.hbm %s1, %s39
          %s479 = sshll.u32 %s477, 4
          %s480 = int_to_ptr.hbm [resolvable:$true] %s479
          %s481 = sshll.u32 %s474, 4
          %s482 = int_to_ptr.vmem [resolvable:$true] %s481
          %484 = dma.hbm_to_vmem [thread:$0]  %s480, 16, %s482, %s472
        $region32: #{tpu_custom_call.1} parent=23 // pred_fallthru
          _
        // Predicated region
        $region33: #{tpu_custom_call.1} parent=23 // pred_check
          %p485 = pneg %p116
        $region34: #{tpu_custom_call.1} parent=23 // pred_check_branch
          %487 = sbr.rel (%p485) target = $region36
        $region35: #{tpu_custom_call.1} parent=23 // pred_region
          %p488 = scmp.lt.s32.totalorder %s40, 1
          %s489 = scalar_select %p488, %s40, 1
          %s490 = smul.addr %s489, 4
          %s491 = smul.addr %s490, 4
          %s492 = scalar_lea.vmem %s2, %s491
        $region36: #{tpu_custom_call.1} parent=23 // pred_fallthru
          _
        // Predicated region
        $region37: #{tpu_custom_call.1} parent=23 // pred_check
          %p493 = pneg %p142
        $region38: #{tpu_custom_call.1} parent=23 // pred_check_branch
          %495 = sbr.rel (%p493) target = $region40
        $region39: #{tpu_custom_call.1} parent=23 // pred_region
          %p496 = scmp.lt.s32.totalorder %s40, 1
          %s497 = scalar_select %p496, %s40, 1
          %s498 = smul.addr %s497, 4
          %s499 = smul.addr %s498, 4
          %s500 = scalar_lea.vmem %s3, %s499
        $region40: #{tpu_custom_call.1} parent=23 // pred_fallthru
          _
        // Predicated region
        $region41: #{tpu_custom_call.1} parent=23 // pred_check
          %p501 = pneg %p168
        $region42: #{tpu_custom_call.1} parent=23 // pred_check_branch
          %503 = sbr.rel (%p501) target = $region44
        $region43: #{tpu_custom_call.1} parent=23 // pred_region
          %p504 = scmp.lt.s32.totalorder %s40, 1
          %s505 = scalar_select %p504, %s40, 1
          %s506 = scalar_lea.vmem %s4, %s505
        $region44: #{tpu_custom_call.1} parent=23 // pred_fallthru
          _
        // Predicated region
        $region45: #{tpu_custom_call.1} parent=23 // pred_check
          %p507 = pneg %p194
        $region46: #{tpu_custom_call.1} parent=23 // pred_check_branch
          %509 = sbr.rel (%p507) target = $region48
        $region47: #{tpu_custom_call.1} parent=23 // pred_region
          %s510 = sand.u32 %s32, 1
          %s511 = scalar_lea.sflag [#allocation6], %s510
          %s512 = sand.u32 %s184, 1
          %s513 = scalar_lea.vmem [#allocation7], %s512
          %515 = vsyncadd %s511, 0
          %s516 = scalar_lea.hbm %s5, %s40
          %s518 = sshll.u32 %s516, 4
          %s519 = int_to_ptr.hbm [resolvable:$true] %s518
          %s520 = sshll.u32 %s513, 4
          %s521 = int_to_ptr.vmem [resolvable:$true] %s520
          %523 = dma.hbm_to_vmem [thread:$0]  %s519, 16, %s521, %s511
        $region48: #{tpu_custom_call.1} parent=23 // pred_fallthru
          _
        // Predicated region
        $region49: #{tpu_custom_call.1} parent=23 // pred_check
          %p524 = pneg %p220
        $region50: #{tpu_custom_call.1} parent=23 // pred_check_branch
          %526 = sbr.rel (%p524) target = $region52
        $region51: #{tpu_custom_call.1} parent=23 // pred_region
          %p527 = scmp.lt.s32.totalorder %s40, 1
          %s528 = scalar_select %p527, %s40, 1
          %s529 = smul.addr %s528, 4
          %s530 = smul.addr %s529, 4
          %s531 = scalar_lea.vmem %s6, %s530
        $region52: #{tpu_custom_call.1} parent=23 // pred_fallthru
          _
        // Predicated region
        $region53: #{tpu_custom_call.1} parent=23 // pred_check
          %p532 = pneg %p246
        $region54: #{tpu_custom_call.1} parent=23 // pred_check_branch
          %534 = sbr.rel (%p532) target = $region56
        $region55: #{tpu_custom_call.1} parent=23 // pred_region
          %p535 = scmp.lt.s32.totalorder %s40, 1
          %s536 = scalar_select %p535, %s40, 1
          %s537 = scalar_lea.vmem %s7, %s536
        $region56: #{tpu_custom_call.1} parent=23 // pred_fallthru
          _
        // Predicated region
        $region57: #{tpu_custom_call.1} parent=23 // pred_check
          %p538 = pneg %p272
        $region58: #{tpu_custom_call.1} parent=23 // pred_check_branch
          %540 = sbr.rel (%p538) target = $region60
        $region59: #{tpu_custom_call.1} parent=23 // pred_region
          %p541 = scmp.lt.s32.totalorder %s40, 1
          %s542 = scalar_select %p541, %s40, 1
          %s543 = smul.addr %s542, 8
          %s544 = smul.addr %s543, 4
          %s545 = scalar_lea.vmem %s8, %s544
        $region60: #{tpu_custom_call.1} parent=23 // pred_fallthru
          _
        // Predicated region
        $region61: #{tpu_custom_call.1} parent=23 // pred_check
          %p546 = pneg %p298
        $region62: #{tpu_custom_call.1} parent=23 // pred_check_branch
          %548 = sbr.rel (%p546) target = $region64
        $region63: #{tpu_custom_call.1} parent=23 // pred_region
          %p549 = scmp.lt.s32.totalorder %s40, 1
          %s550 = scalar_select %p549, %s40, 1
          %s551 = scalar_lea.vmem %s9, %s550
        $region64: #{tpu_custom_call.1} parent=23 // pred_fallthru
          _
        // Predicated region
        $region65: #{tpu_custom_call.1} parent=23 // pred_check
          %p552 = pneg %p324
        $region66: #{tpu_custom_call.1} parent=23 // pred_check_branch
          %554 = sbr.rel (%p552) target = $region68
        $region67: #{tpu_custom_call.1} parent=23 // pred_region
          %p555 = scmp.lt.s32.totalorder %s40, 1
          %s556 = scalar_select %p555, %s40, 1
          %s557 = scalar_lea.vmem %s10, %s556
        $region68: #{tpu_custom_call.1} parent=23 // pred_fallthru
          _
        // Predicated region
        $region69: #{tpu_custom_call.1} parent=23 // pred_check
          %p558 = pneg %p350
        $region70: #{tpu_custom_call.1} parent=23 // pred_check_branch
          %560 = sbr.rel (%p558) target = $region72
        $region71: #{tpu_custom_call.1} parent=23 // pred_region
          %s561 = sand.u32 %s340, 1
          %s562 = scalar_lea.sflag [#allocation9], %s561
          %s563 = sand.u32 %s340, 1
          %s564 = scalar_lea.vmem [#allocation8], %s563
          %566 = vsyncadd %s562, 0
          %s567 = scalar_lea.hbm %s11, %s40
          %s569 = sshll.u32 %s567, 4
          %s570 = int_to_ptr.hbm [resolvable:$true] %s569
          %s571 = sshll.u32 %s564, 4
          %s572 = int_to_ptr.vmem [resolvable:$true] %s571
          %574 = dma.hbm_to_vmem [thread:$0]  %s570, 16, %s572, %s562
        $region72: #{tpu_custom_call.1} parent=23 // pred_fallthru
          _
      $region24: #{tpu_custom_call.1} parent=5 // pred_fallthru
        _
      %p575 = scmp.le.s32.totalorder 1, %s32
      %p576 = scmp.lt.s32.totalorder %s32, 5
      %p577 = pnand %p575, %p576
      %p578 = pneg %p577
      // Predicated region
      $region73: #{tpu_custom_call.1} parent=5 // pred_check
        _
      $region74: #{tpu_custom_call.1} parent=5 // pred_check_branch
        %580 = sbr.rel (%p577) target = $region76
      $region75: #{tpu_custom_call.1} parent=5 // pred_region
        %s581 = ssub.s32 %s32, 1
        %s582 = sand.u32 %s57, 1
        %s583 = scalar_lea.sflag [#allocation3], %s582
        %s584 = sand.u32 %s57, 1
        %s585 = smul.addr %s584, 8
        %s586 = scalar_lea.vmem [#allocation2], %s585
        // Predicated region
        $region77: #{tpu_custom_call.1} parent=75 // pred_check
          %p587 = pneg %p70
        $region78: #{tpu_custom_call.1} parent=75 // pred_check_branch
          %589 = sbr.rel (%p587) target = $region80
        $region79: #{tpu_custom_call.1} parent=75 // pred_region
          %591 = dma.done %s583, 128
        $region80: #{tpu_custom_call.1} parent=75 // pred_fallthru
          _
        %s592 = sand.u32 %s37, 1
        %s593 = scalar_lea.sflag [#allocation6], %s592
        %s594 = sand.u32 %s83, 1
        %s595 = scalar_lea.vmem [#allocation5], %s594
        // Predicated region
        $region81: #{tpu_custom_call.1} parent=75 // pred_check
          %p596 = pneg %p96
        $region82: #{tpu_custom_call.1} parent=75 // pred_check_branch
          %598 = sbr.rel (%p596) target = $region84
        $region83: #{tpu_custom_call.1} parent=75 // pred_region
          %600 = dma.done %s593, 16
        $region84: #{tpu_custom_call.1} parent=75 // pred_fallthru
          _
        %s601 = sand.u32 %s37, 1
        %s602 = scalar_lea.sflag [#allocation6], %s601
        %s603 = sand.u32 %s187, 1
        %s604 = scalar_lea.vmem [#allocation7], %s603
        // Predicated region
        $region85: #{tpu_custom_call.1} parent=75 // pred_check
          %p605 = pneg %p200
        $region86: #{tpu_custom_call.1} parent=75 // pred_check_branch
          %607 = sbr.rel (%p605) target = $region88
        $region87: #{tpu_custom_call.1} parent=75 // pred_region
          %609 = dma.done %s602, 16
        $region88: #{tpu_custom_call.1} parent=75 // pred_fallthru
          _
        %s610 = sand.u32 %s343, 1
        %s611 = scalar_lea.sflag [#allocation9], %s610
        %s612 = sand.u32 %s343, 1
        %s613 = scalar_lea.vmem [#allocation8], %s612
        // Predicated region
        $region89: #{tpu_custom_call.1} parent=75 // pred_check
          %p614 = pneg %p356
        $region90: #{tpu_custom_call.1} parent=75 // pred_check_branch
          %616 = sbr.rel (%p614) target = $region92
        $region91: #{tpu_custom_call.1} parent=75 // pred_region
          %618 = dma.done %s611, 16
        $region92: #{tpu_custom_call.1} parent=75 // pred_fallthru
          _
        %s619 = sand.u32 %s57, 1
        %s620 = scalar_lea.sflag [#allocation3], %s619
        %s621 = sand.u32 %s57, 1
        %s622 = smul.addr %s621, 8
        %s623 = scalar_lea.vmem [#allocation2], %s622
        %p624 = pneg %p70
        %p625 = pneg %p67
        %s626 = sand.u32 %s37, 1
        %s627 = scalar_lea.sflag [#allocation6], %s626
        %s628 = sand.u32 %s83, 1
        %s629 = scalar_lea.vmem [#allocation5], %s628
        %p630 = pneg %p96
        %p631 = pneg %p93
        %p632 = scmp.lt.s32.totalorder %s42, 1
        %s633 = scalar_select %p632, %s42, 1
        %s634 = smul.addr %s633, 4
        %s635 = smul.addr %s634, 4
        %s636 = scalar_lea.vmem %s2, %s635
        %p637 = pneg %p122
        %p638 = pneg %p119
        %p639 = scmp.lt.s32.totalorder %s42, 1
        %s640 = scalar_select %p639, %s42, 1
        %s641 = smul.addr %s640, 4
        %s642 = smul.addr %s641, 4
        %s643 = scalar_lea.vmem %s3, %s642
        %p644 = pneg %p148
        %p645 = pneg %p145
        %p646 = scmp.lt.s32.totalorder %s42, 1
        %s647 = scalar_select %p646, %s42, 1
        %s648 = scalar_lea.vmem %s4, %s647
        %p649 = pneg %p174
        %p650 = pneg %p171
        %s651 = sand.u32 %s37, 1
        %s652 = scalar_lea.sflag [#allocation6], %s651
        %s653 = sand.u32 %s187, 1
        %s654 = scalar_lea.vmem [#allocation7], %s653
        %p655 = pneg %p200
        %p656 = pneg %p197
        %p657 = scmp.lt.s32.totalorder %s42, 1
        %s658 = scalar_select %p657, %s42, 1
        %s659 = smul.addr %s658, 4
        %s660 = smul.addr %s659, 4
        %s661 = scalar_lea.vmem %s6, %s660
        %p662 = pneg %p226
        %p663 = pneg %p223
        %p664 = scmp.lt.s32.totalorder %s42, 1
        %s665 = scalar_select %p664, %s42, 1
        %s666 = scalar_lea.vmem %s7, %s665
        %p667 = pneg %p252
        %p668 = pneg %p249
        %p669 = scmp.lt.s32.totalorder %s42, 1
        %s670 = scalar_select %p669, %s42, 1
        %s671 = smul.addr %s670, 8
        %s672 = smul.addr %s671, 4
        %s673 = scalar_lea.vmem %s8, %s672
        %p674 = pneg %p278
        %p675 = pneg %p275
        %p676 = scmp.lt.s32.totalorder %s42, 1
        %s677 = scalar_select %p676, %s42, 1
        %s678 = scalar_lea.vmem %s9, %s677
        %p679 = pneg %p304
        %p680 = pneg %p301
        %p681 = scmp.lt.s32.totalorder %s42, 1
        %s682 = scalar_select %p681, %s42, 1
        %s683 = scalar_lea.vmem %s10, %s682
        %p684 = pneg %p330
        %p685 = pneg %p327
        %s686 = sand.u32 %s343, 1
        %s687 = scalar_lea.sflag [#allocation9], %s686
        %s688 = sand.u32 %s343, 1
        %s689 = scalar_lea.vmem [#allocation8], %s688
        %p690 = pneg %p356
        %p691 = pneg %p353
        %p692 = pneg %p377
        %p693 = pneg %p374
        %p694 = pneg %p398
        %p695 = pneg %p395
        %p696 = pneg %p424
        %p697 = pneg %p421
        %s698 = sand.u32 %s411, 1
        %s699 = scalar_lea.sflag [#allocation4], %s698
        %s700 = sand.u32 %s411, 1
        %s701 = smul.addr %s700, 8
        %s702 = scalar_lea.vmem [#allocation10], %s701
        %p703 = scmp.lt.s32.totalorder %s42, 1
        %s704 = scalar_select %p703, %s42, 1
        %s705 = smul.addr %s704, 4
        %s706 = smul.addr %s705, 4
        %s707 = scalar_lea.vmem %s2, %s706
        %p708 = scmp.lt.s32.totalorder %s42, 1
        %s709 = scalar_select %p708, %s42, 1
        %s710 = smul.addr %s709, 4
        %s711 = smul.addr %s710, 4
        %s712 = scalar_lea.vmem %s3, %s711
        %p713 = scmp.lt.s32.totalorder %s42, 1
        %s714 = scalar_select %p713, %s42, 1
        %s715 = scalar_lea.vmem %s4, %s714
        %p716 = scmp.lt.s32.totalorder %s42, 1
        %s717 = scalar_select %p716, %s42, 1
        %s718 = smul.addr %s717, 4
        %s719 = smul.addr %s718, 4
        %s720 = scalar_lea.vmem %s6, %s719
        %p721 = scmp.lt.s32.totalorder %s42, 1
        %s722 = scalar_select %p721, %s42, 1
        %s723 = scalar_lea.vmem %s7, %s722
        %p724 = scmp.lt.s32.totalorder %s42, 1
        %s725 = scalar_select %p724, %s42, 1
        %s726 = smul.addr %s725, 8
        %s727 = smul.addr %s726, 4
        %s728 = scalar_lea.vmem %s8, %s727
        %p729 = scmp.lt.s32.totalorder %s42, 1
        %s730 = scalar_select %p729, %s42, 1
        %s731 = scalar_lea.vmem %s9, %s730
        %p732 = scmp.lt.s32.totalorder %s42, 1
        %s733 = scalar_select %p732, %s42, 1
        %s734 = scalar_lea.vmem %s10, %s733
        %p735 = scmp.eq.s32.totalorder %s42, 0
        // Predicated region
        $region93: #{tpu_custom_call.1} parent=75 // pred_check
          %p736 = pneg %p735
        $region94: #{tpu_custom_call.1} parent=75 // pred_check_branch
          %738 = sbr.rel (%p736) target = $region96
        $region95: #{tpu_custom_call.1} parent=75 // pred_region
          %v739 = vld [vmem:[%s586] sm:$0xff]
          %vm740 = vcmask 261120
          %741 = vst.msk [vmem:[%s702] sm:$0xff] %vm740, %v739
        $region96: #{tpu_custom_call.1} parent=75 // pred_fallthru
          _
        %v742 = vld [vmem:[%s702] sm:$0xff]
        %v743 = vld [vmem:[%s595] sm:$0x1]
        %v744 = vld [vmem:[%s707] sm:$0xf]
        %v745 = vld [vmem:[%s707 + $0x4] sm:$0xf]
        %v746 = vld [vmem:[%s707 + $0x8] sm:$0xf]
        %v747 = vld [vmem:[%s707 + $0xc] sm:$0xf]
        %v748 = vunpack.c.l.bf16 %v744
        %v749 = vunpack.c.l.bf16 %v745
        %v750 = vunpack.c.l.bf16 %v746
        %v751 = vunpack.c.l.bf16 %v747
        %vm752 = vcmask 261120
        %v754 = vsel %vm752, %v742, 0
        %756 = vmatpush.msra.mxu0 0.0
        %757 = vmatpush.msra.mxu0 0.0
        %758 = vmatpush.msra.mxu0 0.0
        %759 = vmatpush.msra.mxu0 0.0
        %760 = vmatpush.msra.mxu0 0.0
        %761 = vmatpush.msra.mxu0 0.0
        %762 = vmatpush.msra.mxu0 0.0
        %763 = vmatpush.msra.mxu0 0.0
        %764 = vmatpush.msra.mxu0 0.0
        %765 = vmatpush.msra.mxu0 0.0
        %766 = vmatpush.msra.mxu0 0.0
        %767 = vmatpush.msra.mxu0 0.0
        %768 = vmatpush.msra.mxu0 %v751
        %769 = vmatpush.msra.mxu0 %v750
        %770 = vmatpush.msra.mxu0 %v749
        %771 = vmatpush.msra.mxu0 %v748
        %772 = vmatmul.f32.gmra.mxu0 %v754
        %v773 = vpop.f32.mrf.mxu0
        %v774 = vadd.f32 0.0, %v773
        %775 = vdwg.mxu0
        %v777 = vperm.slane %v743, 0
        %780 = vrot.lane.b32.xlu0 %v774, 112
        %v781 = vpop.permute.xlu0 %780
        %vm782 = vcmask 130048
        %v783 = vsel %vm782, %v774, 0
        %v785 = vsel %vm782, %v781, 0
        %787 = vmatpush.xpose.msra.mxu0 0.0
        %788 = vmatpush.xpose.msra.mxu0 0.0
        %789 = vmatpush.xpose.msra.mxu0 0.0
        %790 = vmatpush.xpose.msra.mxu0 0.0
        %791 = vmatpush.xpose.msra.mxu0 0.0
        %792 = vmatpush.xpose.msra.mxu0 0.0
        %793 = vmatpush.xpose.msra.mxu0 0.0
        %794 = vmatpush.xpose.msra.mxu0 0.0
        %795 = vmatpush.xpose.msra.mxu0 0.0
        %796 = vmatpush.xpose.msra.mxu0 0.0
        %797 = vmatpush.xpose.msra.mxu0 0.0
        %798 = vmatpush.xpose.msra.mxu0 0.0
        %799 = vmatpush.xpose.msra.mxu0 0.0
        %800 = vmatpush.xpose.msra.mxu0 0.0
        %801 = vmatpush.xpose.msra.mxu0 0.0
        %802 = vmatpush.xpose.msra.mxu0 %v785
        %803 = vmatmul.f32.gmra.mxu0 %v783
        %v804 = vpop.f32.mrf.mxu0
        %v805 = vadd.f32 %v777, %v804
        %806 = vdwg.mxu0
        %vm807 = vcmask 64512
        %v808 = vsel %vm807, %v805, -inf
        %809 = vmax.xlane.f32.xlu0 %v808
        %v810 = vpop.xlane.xlu0 %809
        %v811 = vsub.f32 %v805, %v810
        %v812 = vmul.f32 %v811, 1.442695
        %v813 = vpow.pop %v812
        %v814 = vsel %vm807, %v813, 0.0
        %815 = vadd.xlane.f32.xlu0 %v814
        %v816 = vpop.xlane.xlu0 %815
        %v817 = vrcp.pop %v816
        %v818 = vmul.f32 %v816, %v817
        %v819 = vsub.f32 1.0, %v818
        %v820 = vmul.f32 %v817, %v819
        %v821 = vadd.f32 %v817, %v820
        %vm822 = vweird.f32 %v816
        %vm823 = vweird.f32 %v817
        %vm824 = vmor %vm822, %vm823
        %v825 = vsel %vm824, %v817, %v821
        %v826 = vand.u32 2147483647, %v816
        %vm827 = vcmp.eq.f32.partialorder %v826, 8.507059e+37
        %v828 = vand.u32 %v816, 2147483648
        %v829 = vor.u32 1.1754944e-38, %v828
        %v830 = vsel %vm827, %v829, %v825
        %v831 = vmul.f32 %v813, %v830
        %832 = vrot.lane.b32.xlu0 %v774, 96
        %v833 = vpop.permute.xlu0 %832
        %v836 = vsel %vm807, %v831, 0
        %838 = vmatpush.msra.mxu0 0.0
        %839 = vmatpush.msra.mxu0 0.0
        %840 = vmatpush.msra.mxu0 0.0
        %841 = vmatpush.msra.mxu0 0.0
        %842 = vmatpush.msra.mxu0 0.0
        %843 = vmatpush.msra.mxu0 0.0
        %844 = vmatpush.msra.mxu0 0.0
        %845 = vmatpush.msra.mxu0 0.0
        %846 = vmatpush.msra.mxu0 0.0
        %847 = vmatpush.msra.mxu0 0.0
        %848 = vmatpush.msra.mxu0 0.0
        %849 = vmatpush.msra.mxu0 0.0
        %850 = vmatpush.msra.mxu0 0.0
        %851 = vmatpush.msra.mxu0 0.0
        %852 = vmatpush.msra.mxu0 0.0
        %853 = vmatpush.msra.mxu0 %v833
        %854 = vmatmul.f32.gmra.mxu0 %v836
        %v855 = vpop.f32.mrf.mxu0
        %v856 = vadd.f32 0.0, %v855
        %857 = vdwg.mxu0
        %858 = vrot.lane.b32.xlu0 %v774, 80
        %v859 = vpop.permute.xlu0 %858
        %860 = vrot.lane.b32.xlu0 %v774, 64
        %v861 = vpop.permute.xlu0 %860
        %v862 = vsel %vm782, %v859, 0
        %v864 = vsel %vm782, %v861, 0
        %866 = vmatpush.xpose.msra.mxu0 0.0
        %867 = vmatpush.xpose.msra.mxu0 0.0
        %868 = vmatpush.xpose.msra.mxu0 0.0
        %869 = vmatpush.xpose.msra.mxu0 0.0
        %870 = vmatpush.xpose.msra.mxu0 0.0
        %871 = vmatpush.xpose.msra.mxu0 0.0
        %872 = vmatpush.xpose.msra.mxu0 0.0
        %873 = vmatpush.xpose.msra.mxu0 0.0
        %874 = vmatpush.xpose.msra.mxu0 0.0
        %875 = vmatpush.xpose.msra.mxu0 0.0
        %876 = vmatpush.xpose.msra.mxu0 0.0
        %877 = vmatpush.xpose.msra.mxu0 0.0
        %878 = vmatpush.xpose.msra.mxu0 0.0
        %879 = vmatpush.xpose.msra.mxu0 0.0
        %880 = vmatpush.xpose.msra.mxu0 0.0
        %881 = vmatpush.xpose.msra.mxu0 %v864
        %882 = vmatmul.f32.gmra.mxu0 %v862
        %v883 = vpop.f32.mrf.mxu0
        %v884 = vadd.f32 %v777, %v883
        %885 = vdwg.mxu0
        %v886 = vsel %vm807, %v884, -inf
        %887 = vmax.xlane.f32.xlu0 %v886
        %v888 = vpop.xlane.xlu0 %887
        %v889 = vsub.f32 %v884, %v888
        %v890 = vmul.f32 %v889, 1.442695
        %v891 = vpow.pop %v890
        %v892 = vsel %vm807, %v891, 0.0
        %893 = vadd.xlane.f32.xlu0 %v892
        %v894 = vpop.xlane.xlu0 %893
        %v895 = vrcp.pop %v894
        %v896 = vmul.f32 %v894, %v895
        %v897 = vsub.f32 1.0, %v896
        %v898 = vmul.f32 %v895, %v897
        %v899 = vadd.f32 %v895, %v898
        %vm900 = vweird.f32 %v894
        %vm901 = vweird.f32 %v895
        %vm902 = vmor %vm900, %vm901
        %v903 = vsel %vm902, %v895, %v899
        %v904 = vand.u32 2147483647, %v894
        %vm905 = vcmp.eq.f32.partialorder %v904, 8.507059e+37
        %v906 = vand.u32 %v894, 2147483648
        %v907 = vor.u32 1.1754944e-38, %v906
        %v908 = vsel %vm905, %v907, %v903
        %v909 = vmul.f32 %v891, %v908
        %910 = vrot.lane.b32.xlu0 %v774, 48
        %v911 = vpop.permute.xlu0 %910
        %v914 = vsel %vm807, %v909, 0
        %916 = vmatpush.msra.mxu0 0.0
        %917 = vmatpush.msra.mxu0 0.0
        %918 = vmatpush.msra.mxu0 0.0
        %919 = vmatpush.msra.mxu0 0.0
        %920 = vmatpush.msra.mxu0 0.0
        %921 = vmatpush.msra.mxu0 0.0
        %922 = vmatpush.msra.mxu0 0.0
        %923 = vmatpush.msra.mxu0 0.0
        %924 = vmatpush.msra.mxu0 0.0
        %925 = vmatpush.msra.mxu0 0.0
        %926 = vmatpush.msra.mxu0 0.0
        %927 = vmatpush.msra.mxu0 0.0
        %928 = vmatpush.msra.mxu0 0.0
        %929 = vmatpush.msra.mxu0 0.0
        %930 = vmatpush.msra.mxu0 0.0
        %931 = vmatpush.msra.mxu0 %v911
        %932 = vmatmul.f32.gmra.mxu0 %v914
        %v933 = vpop.f32.mrf.mxu0
        %v934 = vadd.f32 0.0, %v933
        %935 = vdwg.mxu0
        %937 = vrot.lane.b32.xlu0 %v934, 16
        %v938 = vpop.permute.xlu0 %937
        %v940 = vsel %vm782, %v856, %v938
        %v941 = vld [vmem:[%s712] sm:$0xf]
        %v942 = vld [vmem:[%s712 + $0x4] sm:$0xf]
        %v943 = vld [vmem:[%s712 + $0x8] sm:$0xf]
        %v944 = vld [vmem:[%s712 + $0xc] sm:$0xf]
        %v945 = vunpack.c.l.bf16 %v941
        %v946 = vunpack.c.l.bf16 %v942
        %v947 = vunpack.c.l.bf16 %v943
        %v948 = vunpack.c.l.bf16 %v944
        %v950 = vsel %vm752, %v940, 0
        %952 = vmatpush.msra.mxu0 0.0
        %953 = vmatpush.msra.mxu0 0.0
        %954 = vmatpush.msra.mxu0 0.0
        %955 = vmatpush.msra.mxu0 0.0
        %956 = vmatpush.msra.mxu0 0.0
        %957 = vmatpush.msra.mxu0 0.0
        %958 = vmatpush.msra.mxu0 0.0
        %959 = vmatpush.msra.mxu0 0.0
        %960 = vmatpush.msra.mxu0 0.0
        %961 = vmatpush.msra.mxu0 0.0
        %962 = vmatpush.msra.mxu0 0.0
        %963 = vmatpush.msra.mxu0 0.0
        %964 = vmatpush.msra.mxu0 %v948
        %965 = vmatpush.msra.mxu0 %v947
        %966 = vmatpush.msra.mxu0 %v946
        %967 = vmatpush.msra.mxu0 %v945
        %968 = vmatmul.f32.gmra.mxu0 %v950
        %v969 = vpop.f32.mrf.mxu0
        %v970 = vadd.f32 %v742, %v969
        %971 = vdwg.mxu0
        %v972 = vld [vmem:[%s715] sm:$0x1]
        %v973 = vld [vmem:[%s604] sm:$0x1]
        %v974 = vsel %vm752, %v970, 0.0
        %975 = vadd.xlane.f32.xlu0 %v974
        %v976 = vpop.xlane.xlu0 %975
        %v977 = vrcp.pop 32.0
        %v978 = vmul.f32 32.0, %v977
        %v979 = vsub.f32 1.0, %v978
        %v980 = vmul.f32 %v977, %v979
        %v981 = vadd.f32 %v977, %v980
        %vm982 = vweird.f32 %v977
        %v983 = vsel %vm982, %v977, %v981
        %v984 = vmul.f32 %v976, %v983
        %v985 = vsub.f32 %v970, %v984
        %v986 = vmul.f32 %v985, %v985
        %v987 = vsel %vm752, %v986, 0.0
        %988 = vadd.xlane.f32.xlu0 %v987
        %v989 = vpop.xlane.xlu0 %988
        %v990 = vmul.f32 %v989, %v983
        %v991 = vadd.f32 %v990, 1e-06
        %v992 = vrsqrt.pop %v991
        %v993 = vmul.f32 %v992, %v991
        %v994 = vmul.f32 %v993, %v992
        %v995 = vmul.f32 0.5, %v994
        %v996 = vsub.f32 1.5, %v995
        %v997 = vmul.f32 %v992, %v996
        %vm998 = vweird.f32 %v991
        %vm999 = vweird.f32 %v992
        %vm1000 = vmor %vm998, %vm999
        %v1001 = vsel %vm1000, %v992, %v997
        %v1002 = vmul.f32 %v985, %v1001
        %v1004 = vperm.slane %v972, 0
        %v1006 = vmul.f32 %v1002, %v1004
        %v1008 = vperm.slane %v973, 0
        %v1010 = vadd.f32 %v1006, %v1008
        %v1011 = vld [vmem:[%s720] sm:$0xf]
        %v1012 = vld [vmem:[%s720 + $0x4] sm:$0xf]
        %v1013 = vld [vmem:[%s720 + $0x8] sm:$0xf]
        %v1014 = vld [vmem:[%s720 + $0xc] sm:$0xf]
        %v1015 = vunpack.c.l.bf16 %v1011
        %v1016 = vunpack.c.l.bf16 %v1012
        %v1017 = vunpack.c.l.bf16 %v1013
        %v1018 = vunpack.c.l.bf16 %v1014
        %v1019 = vld [vmem:[%s723] sm:$0x1]
        %v1021 = vperm.slane %v1019, 0
        %v1024 = vsel %vm752, %v1010, 0
        %1026 = vmatpush.msra.mxu0 0.0
        %1027 = vmatpush.msra.mxu0 0.0
        %1028 = vmatpush.msra.mxu0 0.0
        %1029 = vmatpush.msra.mxu0 0.0
        %1030 = vmatpush.msra.mxu0 0.0
        %1031 = vmatpush.msra.mxu0 0.0
        %1032 = vmatpush.msra.mxu0 0.0
        %1033 = vmatpush.msra.mxu0 0.0
        %1034 = vmatpush.msra.mxu0 0.0
        %1035 = vmatpush.msra.mxu0 0.0
        %1036 = vmatpush.msra.mxu0 0.0
        %1037 = vmatpush.msra.mxu0 0.0
        %1038 = vmatpush.msra.mxu0 %v1018
        %1039 = vmatpush.msra.mxu0 %v1017
        %1040 = vmatpush.msra.mxu0 %v1016
        %1041 = vmatpush.msra.mxu0 %v1015
        %1042 = vmatmul.f32.gmra.mxu0 %v1024
        %v1043 = vpop.f32.mrf.mxu0
        %v1044 = vadd.f32 %v1021, %v1043
        %1045 = vdwg.mxu0
        %v1046 = vmax.f32 %v1044, 0.0
        %v1047 = vld [vmem:[%s728] sm:$0xf]
        %v1048 = vld [vmem:[%s728 + $0x4] sm:$0xf]
        %v1049 = vld [vmem:[%s728 + $0x8] sm:$0xf]
        %v1050 = vld [vmem:[%s728 + $0xc] sm:$0xf]
        %v1051 = vld [vmem:[%s728 + $0x10] sm:$0xf]
        %v1052 = vld [vmem:[%s728 + $0x14] sm:$0xf]
        %v1053 = vld [vmem:[%s728 + $0x18] sm:$0xf]
        %v1054 = vld [vmem:[%s728 + $0x1c] sm:$0xf]
        %v1055 = vunpack.c.l.bf16 %v1047
        %v1056 = vunpack.c.l.bf16 %v1048
        %v1057 = vunpack.c.l.bf16 %v1049
        %v1058 = vunpack.c.l.bf16 %v1050
        %v1059 = vunpack.c.l.bf16 %v1051
        %v1060 = vunpack.c.l.bf16 %v1052
        %v1061 = vunpack.c.l.bf16 %v1053
        %v1062 = vunpack.c.l.bf16 %v1054
        %v1063 = vld [vmem:[%s731] sm:$0x1]
        %v1065 = vperm.slane %v1063, 0
        %vm1067 = vcmask 523264
        %v1069 = vsel %vm1067, %v1046, 0
        %1071 = vmatpush.msra.mxu0 0.0
        %1072 = vmatpush.msra.mxu0 0.0
        %1073 = vmatpush.msra.mxu0 0.0
        %1074 = vmatpush.msra.mxu0 0.0
        %1075 = vmatpush.msra.mxu0 0.0
        %1076 = vmatpush.msra.mxu0 0.0
        %1077 = vmatpush.msra.mxu0 0.0
        %1078 = vmatpush.msra.mxu0 0.0
        %1079 = vmatpush.msra.mxu0 %v1062
        %1080 = vmatpush.msra.mxu0 %v1061
        %1081 = vmatpush.msra.mxu0 %v1060
        %1082 = vmatpush.msra.mxu0 %v1059
        %1083 = vmatpush.msra.mxu0 %v1058
        %1084 = vmatpush.msra.mxu0 %v1057
        %1085 = vmatpush.msra.mxu0 %v1056
        %1086 = vmatpush.msra.mxu0 %v1055
        %1087 = vmatmul.f32.gmra.mxu0 %v1069
        %v1088 = vpop.f32.mrf.mxu0
        %v1089 = vadd.f32 %v1065, %v1088
        %1090 = vdwg.mxu0
        %v1091 = vadd.f32 %v1089, %v1010
        %v1092 = vld [vmem:[%s734] sm:$0x1]
        %v1093 = vld [vmem:[%s613] sm:$0x1]
        %v1094 = vsel %vm752, %v1091, 0.0
        %1095 = vadd.xlane.f32.xlu0 %v1094
        %v1096 = vpop.xlane.xlu0 %1095
        %v1097 = vmul.f32 %v1096, %v983
        %v1098 = vsub.f32 %v1091, %v1097
        %v1099 = vmul.f32 %v1098, %v1098
        %v1100 = vsel %vm752, %v1099, 0.0
        %1101 = vadd.xlane.f32.xlu0 %v1100
        %v1102 = vpop.xlane.xlu0 %1101
        %v1103 = vmul.f32 %v1102, %v983
        %v1104 = vadd.f32 %v1103, 1e-06
        %v1105 = vrsqrt.pop %v1104
        %v1106 = vmul.f32 %v1105, %v1104
        %v1107 = vmul.f32 %v1106, %v1105
        %v1108 = vmul.f32 0.5, %v1107
        %v1109 = vsub.f32 1.5, %v1108
        %v1110 = vmul.f32 %v1105, %v1109
        %vm1111 = vweird.f32 %v1104
        %vm1112 = vweird.f32 %v1105
        %vm1113 = vmor %vm1111, %vm1112
        %v1114 = vsel %vm1113, %v1105, %v1110
        %v1115 = vmul.f32 %v1098, %v1114
        %v1117 = vperm.slane %v1092, 0
        %v1119 = vmul.f32 %v1115, %v1117
        %v1121 = vperm.slane %v1093, 0
        %v1123 = vadd.f32 %v1119, %v1121
        %p1124 = scmp.eq.s32.totalorder %s42, 1
        // Predicated region
        $region97: #{tpu_custom_call.1} parent=75 // pred_check
          %p1125 = pneg %p1124
        $region98: #{tpu_custom_call.1} parent=75 // pred_check_branch
          %1127 = sbr.rel (%p1125) target = $region100
        $region99: #{tpu_custom_call.1} parent=75 // pred_region
          %v1128 = vld [vmem:[%s12] sm:$0x1]
          %v1129 = vld [vmem:[%s13] sm:$0x1]
          %v1130 = vsel %vm752, %v1123, 0.0
          %1131 = vadd.xlane.f32.xlu0 %v1130
          %v1132 = vpop.xlane.xlu0 %1131
          %v1133 = vmul.f32 %v1132, %v983
          %v1134 = vsub.f32 %v1123, %v1133
          %v1135 = vmul.f32 %v1134, %v1134
          %v1136 = vsel %vm752, %v1135, 0.0
          %1137 = vadd.xlane.f32.xlu0 %v1136
          %v1138 = vpop.xlane.xlu0 %1137
          %v1139 = vmul.f32 %v1138, %v983
          %v1140 = vadd.f32 %v1139, 1e-06
          %v1141 = vrsqrt.pop %v1140
          %v1142 = vmul.f32 %v1141, %v1140
          %v1143 = vmul.f32 %v1142, %v1141
          %v1144 = vmul.f32 0.5, %v1143
          %v1145 = vsub.f32 1.5, %v1144
          %v1146 = vmul.f32 %v1141, %v1145
          %vm1147 = vweird.f32 %v1140
          %vm1148 = vweird.f32 %v1141
          %vm1149 = vmor %vm1147, %vm1148
          %v1150 = vsel %vm1149, %v1141, %v1146
          %v1151 = vmul.f32 %v1134, %v1150
          %v1153 = vperm.slane %v1128, 0
          %v1155 = vmul.f32 %v1151, %v1153
          %v1157 = vperm.slane %v1129, 0
          %v1159 = vadd.f32 %v1155, %v1157
          %1160 = vst.msk [vmem:[%s702] sm:$0xff] %vm752, %v1159
        $region100: #{tpu_custom_call.1} parent=75 // pred_fallthru
          _
        %p1161 = scmp.ne.s32.totalorder %s42, 1
        // Predicated region
        $region101: #{tpu_custom_call.1} parent=75 // pred_check
          %p1162 = pneg %p1161
        $region102: #{tpu_custom_call.1} parent=75 // pred_check_branch
          %1164 = sbr.rel (%p1162) target = $region104
        $region103: #{tpu_custom_call.1} parent=75 // pred_region
          %1165 = vst.msk [vmem:[%s702] sm:$0xff] %vm752, %v1123
        $region104: #{tpu_custom_call.1} parent=75 // pred_fallthru
          _
        %s1166 = sand.u32 %s411, 1
        %s1167 = scalar_lea.sflag [#allocation4], %s1166
        %s1168 = sand.u32 %s411, 1
        %s1169 = smul.addr %s1168, 8
        %s1170 = scalar_lea.vmem [#allocation10], %s1169
        // Predicated region
        $region105: #{tpu_custom_call.1} parent=75 // pred_check
          %p1171 = pneg %p421
        $region106: #{tpu_custom_call.1} parent=75 // pred_check_branch
          %1173 = sbr.rel (%p1171) target = $region108
        $region107: #{tpu_custom_call.1} parent=75 // pred_region
          %1175 = vsyncadd %s1167, 0
          %s1176 = smul.addr %s41, 8
          %s1177 = scalar_lea.hbm %s14, %s1176
          %s1179 = sshll.u32 %s1170, 4
          %s1180 = int_to_ptr.vmem [resolvable:$true] %s1179
          %s1181 = sshll.u32 %s1177, 4
          %s1182 = int_to_ptr.hbm [resolvable:$true] %s1181
          %1184 = dma.vmem_to_hbm [thread:$0]  %s1180, 128, %s1182, %s1167
        $region108: #{tpu_custom_call.1} parent=75 // pred_fallthru
          _
      $region76: #{tpu_custom_call.1} parent=5 // pred_fallthru
        _
      %p1185 = scmp.le.s32.totalorder 2, %s32
      // Predicated region
      $region109: #{tpu_custom_call.1} parent=5 // pred_check
        %p1186 = pneg %p1185
      $region110: #{tpu_custom_call.1} parent=5 // pred_check_branch
        %1188 = sbr.rel (%p1186) target = $region112
      $region111: #{tpu_custom_call.1} parent=5 // pred_region
        %s1189 = ssub.s32 %s32, 2
        // Predicated region
        $region113: #{tpu_custom_call.1} parent=111 // pred_check
          %p1190 = pneg %p427
        $region114: #{tpu_custom_call.1} parent=111 // pred_check_branch
          %1192 = sbr.rel (%p1190) target = $region116
        $region115: #{tpu_custom_call.1} parent=111 // pred_region
          %s1193 = sand.u32 %s412, 1
          %s1194 = scalar_lea.sflag [#allocation4], %s1193
          %s1195 = sand.u32 %s412, 1
          %s1196 = smul.addr %s1195, 8
          %s1197 = scalar_lea.vmem [#allocation10], %s1196
          %1199 = dma.done %s1194, 128
        $region116: #{tpu_custom_call.1} parent=111 // pred_fallthru
          _
      $region112: #{tpu_custom_call.1} parent=5 // pred_fallthru
        _
    $region6: #{tpu_custom_call.1} parent=1 // loop_footer
      %s36 = sadd.s32 1, %s32
    $region7: #{tpu_custom_call.1} parent=1 // loop_footer_branch
      %31 = sbr.rel target = $region3
    $region8: #{tpu_custom_call.1} parent=1 // loop_exit
      _
    %1200 = vsyncpa [#allocation3], 1
    %s1201 = scalar_lea.sflag [#allocation3], 1
    %1202 = vsyncpa %s1201, 1
    %1203 = vsyncpa [#allocation6], 1
    %s1204 = scalar_lea.sflag [#allocation6], 1
    %1205 = vsyncpa %s1204, 1
    %1206 = vsyncpa [#allocation9], 1
    %s1207 = scalar_lea.sflag [#allocation9], 1
    %1208 = vsyncpa %s1207, 1
    %1209 = vsyncpa [#allocation4], 1
    %s1210 = scalar_lea.sflag [#allocation4], 1
    %1211 = vsyncpa %s1210, 1

</llo_original>
